<compile_context>
chip_gen: v5e
topology: v5e:2x2
jax: 0.10.0
libtpu: 0.0.40
codegen_flags: <defaults>
</compile_context>

<pallas_src>
import functools

import jax
import jax.numpy as jnp
from jax import lax
from jax.experimental import pallas as pl
from jax.experimental.pallas import tpu as pltpu


def _round_up(a, b):
    return (a + b - 1) // b * b


def _sage_kernel(adj_ref, x_ref, w_ref, b_ref, o_ref, acc_ref, *,
                 tk, n_valid, need_k_mask, x_resident):
    """One (row-tile i, reduction-tile k) grid step."""
    k = pl.program_id(1)

    @pl.when(k == 0)
    def _init():
        acc_ref[...] = jnp.zeros_like(acc_ref)

    a = adj_ref[...]
    if need_k_mask:
        # adj is not padded in HBM; the overhanging K-tail lanes of the last
        # tile contain garbage.  Zero them exactly (x's padded tail rows are
        # also exact zeros, so the tail contributes exactly 0).
        col = k * tk + lax.broadcasted_iota(jnp.int32, a.shape, 1)
        a = jnp.where(col < n_valid, a, jnp.zeros_like(a))

    if x_resident:
        xk = x_ref[pl.ds(pl.multiple_of(k * tk, tk), tk), :]
    else:
        xk = x_ref[...]

    # aggregation: acc += adj_tile @ x_tile   (tm, tk) x (tk, F_in_p)
    acc_ref[...] += jnp.dot(a, xk, preferred_element_type=jnp.float32)

    @pl.when(k == pl.num_programs(1) - 1)
    def _finalize():
        # projection in f32: out = h @ W^T + b   (tm, F_in_p) x (F_in_p, F_out_p)
        out = jnp.dot(acc_ref[...], w_ref[...],
                      preferred_element_type=jnp.float32)
        o_ref[...] = (out + b_ref[...]).astype(o_ref.dtype)


def sage_layer(x, adj, weight, bias, *, tm=None, tk=None, x_resident=None):
    """Pallas equivalent of SAGELayer.forward.

    x      : (N, F_in)    node features
    adj    : (N, N)       dense adjacency (f32 or bf16)
    weight : (F_out, F_in)  PyTorch Linear convention
    bias   : (F_out,)
    returns (N, F_out) float32
    """
    N, F_in = x.shape
    F_out = weight.shape[0]
    assert adj.shape == (N, N)
    assert weight.shape == (F_out, F_in)
    assert bias.shape == (F_out,)

    # Lane-dense feature dims (multiples of 128).
    F_in_p = _round_up(F_in, 128)
    F_out_p = _round_up(F_out, 128)

    # Tile selection: large tiles (HBM-bound kernel), >= 2 row tiles when
    # N allows so the v7x megacore parallel axis is not degenerate.
    if tm is None:
        tm = min(1024, _round_up(N, 8))
        if N >= 512:
            tm = min(tm, _round_up(pl.cdiv(N, 2), 256))
    if tk is None:
        tk = min(2048, _round_up(N, 128))
    assert tm % 8 == 0 or tm == N
    assert tk % 128 == 0 or tk == N

    grid_m = pl.cdiv(N, tm)
    grid_k = pl.cdiv(N, tk)
    N_k = grid_k * tk                      # padded reduction length (x rows)
    need_k_mask = (N % tk) != 0

    # Operand prep. adj gets at most one cast pass (no pad pass); callers that
    # reuse adj across layers should pre-cast to bf16 once.
    adj_bf = adj if adj.dtype == jnp.bfloat16 else adj.astype(jnp.bfloat16)
    x_p = jnp.zeros((N_k, F_in_p), jnp.bfloat16).at[:N, :F_in].set(
        x.astype(jnp.bfloat16))
    w_p = jnp.zeros((F_in_p, F_out_p), jnp.float32).at[:F_in, :F_out].set(
        weight.T.astype(jnp.float32))
    b_p = jnp.zeros((1, F_out_p), jnp.float32).at[0, :F_out].set(
        bias.astype(jnp.float32))

    # Resident x (fetched once) when it fits comfortably in VMEM, else stream.
    x_bytes = N_k * F_in_p * 2
    if x_resident is None:
        x_resident = x_bytes <= 6 * 1024 * 1024
    if x_resident:
        x_spec = pl.BlockSpec((N_k, F_in_p), lambda i, k: (0, 0))
    else:
        x_spec = pl.BlockSpec((tk, F_in_p), lambda i, k: (k, 0))

    # VMEM budget (leave headroom for v7x's 64 MiB physical VMEM).
    vmem_need = (2 * tm * tk * 2                                    # adj x2 buf
                 + 2 * (x_bytes if x_resident else tk * F_in_p * 2)  # x
                 + 2 * tm * F_out_p * 4                              # out x2 buf
                 + tm * F_in_p * 4                                   # accumulator
                 + F_in_p * F_out_p * 4 + 8 * F_out_p * 4)           # W, bias
    vmem_limit = int(min(max(int(vmem_need * 1.5), 32 * 1024 * 1024),
                         56 * 1024 * 1024))

    cost = pl.CostEstimate(
        flops=2 * N * N * F_in_p + 2 * N * F_in_p * F_out_p,
        transcendentals=0,
        bytes_accessed=(2 * N * N                                    # adj (bf16)
                        + (1 if x_resident else grid_m) * N_k * F_in_p * 2
                        + 4 * F_in_p * F_out_p + 4 * F_out_p
                        + 4 * N * F_out_p),
    )

    kernel = functools.partial(_sage_kernel, tk=tk, n_valid=N,
                               need_k_mask=need_k_mask, x_resident=x_resident)

    out = pl.pallas_call(
        kernel,
        out_shape=jax.ShapeDtypeStruct((N, F_out_p), jnp.float32),
        grid_spec=pltpu.PrefetchScalarGridSpec(
            num_scalar_prefetch=0,
            grid=(grid_m, grid_k),
            in_specs=[
                pl.BlockSpec((tm, tk), lambda i, k: (i, k)),            # adj
                x_spec,                                                 # x
                pl.BlockSpec((F_in_p, F_out_p), lambda i, k: (0, 0)),   # W^T
                pl.BlockSpec((1, F_out_p), lambda i, k: (0, 0)),        # bias
            ],
            out_specs=pl.BlockSpec((tm, F_out_p), lambda i, k: (i, 0)),
            scratch_shapes=[pltpu.VMEM((tm, F_in_p), jnp.float32)],
        ),
        compiler_params=pltpu.CompilerParams(
            dimension_semantics=("parallel", "arbitrary"),
            vmem_limit_bytes=vmem_limit),
        cost_estimate=cost,
    )(adj_bf, x_p, w_p, b_p)

    return out[:, :F_out]


def _make_inputs(key, N, F_in, F_out, density=0.1):
    kx, ka, kw, kb, km = jax.random.split(key, 5)
    x = jax.random.normal(kx, (N, F_in), dtype=jnp.float32)
    vals = jax.random.normal(ka, (N, N), dtype=jnp.float32)
    mask = jax.random.bernoulli(km, p=density, shape=(N, N))
    adj = jnp.where(mask, vals, 0.0).astype(jnp.float32)
    bound = 1.0 / jnp.sqrt(F_in)
    weight = jax.random.uniform(kw, (F_out, F_in), dtype=jnp.float32,
                                minval=-bound, maxval=bound)
    bias = jax.random.uniform(kb, (F_out,), dtype=jnp.float32,
                              minval=-bound, maxval=bound)
    return x, adj, weight, bias


def _check(out, ref, tag):
    assert out.shape == ref.shape, f"{tag}: {out.shape} vs {ref.shape}"
    scale = float(jnp.max(jnp.abs(ref))) + 1e-6
    err = float(jnp.max(jnp.abs(out - ref)))
    # bf16 aggregation with f32 accumulation + f32 projection.
    assert err <= 5e-2 * scale, f"{tag}: max err {err} vs scale {scale}"


if __name__ == "__main__":
    key = jax.random.PRNGKey(0)
    k1, k2 = jax.random.split(key)

    # Test 1: aligned shapes, default tiles -> resident x, grid (2, 1).
    N, F_in, F_out = 512, 128, 128
    x, adj, weight, bias = _make_inputs(k1, N, F_in, F_out)
    ref = (adj @ x) @ weight.T + bias
    out = jax.block_until_ready(sage_layer(x, adj, weight, bias))
    _check(out, ref, "defaults")

    # Test 2: small explicit tiles -> exercises the K-accumulation pipeline
    # (init / accumulate / finalize) and resident-x dynamic slicing.
    out2 = jax.block_until_ready(sage_layer(x, adj, weight, bias, tm=128, tk=128))
    _check(out2, ref, "multi-k")

    # Test 3: non-tile-multiple N, narrow feature dims, streamed x ->
    # exercises feature padding, K-tail masking and the streamed-x path.
    N3, F_in3, F_out3 = 200, 64, 96
    x3, adj3, weight3, bias3 = _make_inputs(k2, N3, F_in3, F_out3)
    ref3 = (adj3 @ x3) @ weight3.T + bias3
    out3 = jax.block_until_ready(
        sage_layer(x3, adj3, weight3, bias3, tk=128, x_resident=False))
    _check(out3, ref3, "padded-streamed")

    print("KERNEL_OK")
</pallas_src>

<mosaic_0001>
module attributes {stable_mosaic.version = 11 : i64} {
  func.func @_sage_kernel(%arg0: i32, %arg1: i32, %arg2: memref<256x512xbf16, #tpu.memory_space<vmem>>, %arg3: memref<512x128xbf16, #tpu.memory_space<vmem>>, %arg4: memref<128x128xf32, #tpu.memory_space<vmem>>, %arg5: memref<1x128xf32, #tpu.memory_space<vmem>>, %arg6: memref<256x128xf32, #tpu.memory_space<vmem>>, %arg7: memref<256x128xf32, #tpu.memory_space<vmem>>) attributes {dimension_semantics = [#tpu.dimension_semantics<parallel>, #tpu.dimension_semantics<arbitrary>], iteration_bounds = array<i64: 2, 1>, scalar_prefetch = 0 : i64, scratch_operands = 1 : i64, tpu.core_type = #tpu.core_type<tc>, window_params = [{transform_indices = @transform_0, window_bounds = array<i64: 256, 512>}, {pipeline_mode = #tpu.pipeline_mode<synchronous>, transform_indices = @transform_1, window_bounds = array<i64: 512, 128>}, {pipeline_mode = #tpu.pipeline_mode<synchronous>, transform_indices = @transform_2, window_bounds = array<i64: 128, 128>}, {pipeline_mode = #tpu.pipeline_mode<synchronous>, transform_indices = @transform_3, window_bounds = array<i64: 1, 128>}, {transform_indices = @transform_4, window_bounds = array<i64: 256, 128>}]} {
    %c0_i32 = arith.constant 0 : i32
    %0 = arith.cmpi eq, %arg1, %c0_i32 : i32
    %1 = arith.extui %0 : i1 to i32
    %c0_i32_0 = arith.constant 0 : i32
    %2 = arith.cmpi ne, %1, %c0_i32_0 : i32
    scf.if %2 {
      %cst_9 = arith.constant 0.000000e+00 : f32
      %15 = vector.broadcast %cst_9 : f32 to vector<256x128xf32>
      %c0_10 = arith.constant 0 : index
      %c0_11 = arith.constant 0 : index
      %16 = vector.load %arg7[%c0_10, %c0_11] : memref<256x128xf32, #tpu.memory_space<vmem>>, vector<256x128xf32>
      tpu.vector_store %arg7[%c0_10, %c0_11], %15 {strides = array<i32>} : memref<256x128xf32, #tpu.memory_space<vmem>>, vector<256x128xf32>,
    } else {
    }
    %c0 = arith.constant 0 : index
    %c0_1 = arith.constant 0 : index
    %3 = vector.load %arg2[%c0, %c0_1] : memref<256x512xbf16, #tpu.memory_space<vmem>>, vector<256x512xbf16>
    %c512_i32 = arith.constant 512 : i32
    %4 = arith.muli %arg1, %c512_i32 : i32
    %5 = tpu.assume_multiple %4, 512 : i32
    %6 = arith.index_cast %5 : i32 to index
    %c0_2 = arith.constant 0 : index
    %7 = vector.load %arg3[%6, %c0_2] : memref<512x128xbf16, #tpu.memory_space<vmem>>, vector<512x128xbf16>
    %c0_3 = arith.constant 0 : index
    %c0_4 = arith.constant 0 : index
    %8 = vector.load %arg7[%c0_3, %c0_4] : memref<256x128xf32, #tpu.memory_space<vmem>>, vector<256x128xf32>
    %cst = arith.constant dense<0.000000e+00> : vector<256x128xf32>
    %9 = tpu.matmul %3, %7, %cst {dimension_numbers = #tpu.dot_dimension_numbers<[1], [0], [0], [1], [0, 0, 1, 1], [], []>} : vector<256x512xbf16>, vector<512x128xbf16>, vector<256x128xf32> -> vector<256x128xf32>
    %10 = arith.addf %8, %9 : vector<256x128xf32>
    %c0_5 = arith.constant 0 : index
    %c0_6 = arith.constant 0 : index
    %11 = vector.load %arg7[%c0_5, %c0_6] : memref<256x128xf32, #tpu.memory_space<vmem>>, vector<256x128xf32>
    tpu.vector_store %arg7[%c0_5, %c0_6], %10 {strides = array<i32>} : memref<256x128xf32, #tpu.memory_space<vmem>>, vector<256x128xf32>,
    %c0_i32_7 = arith.constant 0 : i32
    %12 = arith.cmpi eq, %arg1, %c0_i32_7 : i32
    %13 = arith.extui %12 : i1 to i32
    %c0_i32_8 = arith.constant 0 : i32
    %14 = arith.cmpi ne, %13, %c0_i32_8 : i32
    scf.if %14 {
      %c0_9 = arith.constant 0 : index
      %c0_10 = arith.constant 0 : index
      %15 = vector.load %arg7[%c0_9, %c0_10] : memref<256x128xf32, #tpu.memory_space<vmem>>, vector<256x128xf32>
      %c0_11 = arith.constant 0 : index
      %c0_12 = arith.constant 0 : index
      %16 = vector.load %arg4[%c0_11, %c0_12] : memref<128x128xf32, #tpu.memory_space<vmem>>, vector<128x128xf32>
      %cst_13 = arith.constant dense<0.000000e+00> : vector<256x128xf32>
      %17 = tpu.matmul %15, %16, %cst_13 {dimension_numbers = #tpu.dot_dimension_numbers<[1], [0], [0], [1], [0, 0, 1, 1], [], []>} : vector<256x128xf32>, vector<128x128xf32>, vector<256x128xf32> -> vector<256x128xf32>
      %c0_14 = arith.constant 0 : index
      %c0_15 = arith.constant 0 : index
      %18 = vector.load %arg5[%c0_14, %c0_15] : memref<1x128xf32, #tpu.memory_space<vmem>>, vector<1x128xf32>
      %19 = vector.broadcast %18 : vector<1x128xf32> to vector<256x128xf32>
      %20 = arith.addf %17, %19 : vector<256x128xf32>
      %c0_16 = arith.constant 0 : index
      %c0_17 = arith.constant 0 : index
      %21 = vector.load %arg6[%c0_16, %c0_17] : memref<256x128xf32, #tpu.memory_space<vmem>>, vector<256x128xf32>
      tpu.vector_store %arg6[%c0_16, %c0_17], %20 {strides = array<i32>} : memref<256x128xf32, #tpu.memory_space<vmem>>, vector<256x128xf32>,
    } else {
    }
    return
  }
  func.func @transform_0(%arg0: i32, %arg1: i32) -> (i32, i32) {
    %c0_i32 = arith.constant 0 : i32
    return %arg0, %arg1 : i32, i32
  }
  func.func @transform_1(%arg0: i32, %arg1: i32) -> (i32, i32) {
    %c0_i32 = arith.constant 0 : i32
    %c0_i32_0 = arith.constant 0 : i32
    %c0_i32_1 = arith.constant 0 : i32
    return %c0_i32, %c0_i32_0 : i32, i32
  }
  func.func @transform_2(%arg0: i32, %arg1: i32) -> (i32, i32) {
    %c0_i32 = arith.constant 0 : i32
    %c0_i32_0 = arith.constant 0 : i32
    %c0_i32_1 = arith.constant 0 : i32
    return %c0_i32, %c0_i32_0 : i32, i32
  }
  func.func @transform_3(%arg0: i32, %arg1: i32) -> (i32, i32) {
    %c0_i32 = arith.constant 0 : i32
    %c0_i32_0 = arith.constant 0 : i32
    %c0_i32_1 = arith.constant 0 : i32
    return %c0_i32, %c0_i32_0 : i32, i32
  }
  func.func @transform_4(%arg0: i32, %arg1: i32) -> (i32, i32) {
    %c0_i32 = arith.constant 0 : i32
    %c0_i32_0 = arith.constant 0 : i32
    return %arg0, %c0_i32 : i32, i32
  }
}

</mosaic_0001>

<llo_original>
// kernel: tpu_custom_call.1
$region0: #{tpu_custom_call.1}
  #allocation0 [shape = 'u32[]', space=smem, size = 0x4, offset = 0x4, fixed_abs, tag = 'smem constant byte address 0x4 - core index']
  #allocation1 [shape = 'u32[72,128]{1,0:T(1,128)}', space=vmem, size = 0x9000, scoped, tag = 'internal scratch']
  #allocation2 [shape = 'f32[256,128]{1,0:T(8,128)}', space=vmem, size = 0x20000, scoped, tag = 'scratch operand']
  %s0 = inlined_call_operand.hbm [shape: bf16[512,512], index: 0, kind: input, shape index: {}]
  %s1 = inlined_call_operand.hbm [shape: bf16[512,128], index: 1, kind: input, shape index: {}]
  %s2 = inlined_call_operand.hbm [shape: f32[128,128], index: 2, kind: input, shape index: {}]
  %s3 = inlined_call_operand.vmem [shape: f32[1,128], index: 3, kind: input, shape index: {}]
  %s4 = inlined_call_operand.hbm [shape: f32[512,128], index: 4, kind: output, shape index: {}]
  %s5 = sld [smem:[#allocation0]]
  $region69: #{tpu_custom_call.1} parent=0
    _
  %s7 = ssub.s32 1, %s5
  %s8 = scalar_select 0, %s7, %s5
  $region1: #{tpu_custom_call.1} parent=0
    #allocation3 [shape = 'u8[524288]{0}', space=vmem, size = 0x80000, scoped, tag = 'input window, operand 0']
    #allocation4 [shape = 's32[2]{0}', space=sflag, size = 0x8, scoped, tag = 'scoped memory for tpu_custom_call.1']
    #allocation5 [shape = 's32[2]{0}', space=sflag, size = 0x8, scoped, tag = 'scoped memory for tpu_custom_call.1']
    #allocation6 [shape = 'u8[131072]{0}', space=vmem, size = 0x20000, scoped, tag = 'input window, operand 1, single buffered']
    #allocation7 [shape = 's32[1]{0}', space=sflag, size = 0x4, scoped, tag = 'scoped memory for tpu_custom_call.1']
    #allocation8 [shape = 'u8[65536]{0}', space=vmem, size = 0x10000, scoped, tag = 'input window, operand 2, single buffered']
    #allocation9 [shape = 'u8[262144]{0}', space=vmem, size = 0x40000, scoped, tag = 'output window, operand 0']
    %9 = vsyncpa [#allocation4], 0
    %s10 = scalar_lea.sflag [#allocation4], 1
    %11 = vsyncpa %s10, 0
    %12 = vsyncpa [#allocation7], 0
    %13 = vsyncpa [#allocation5], 0
    %s14 = scalar_lea.sflag [#allocation5], 1
    %15 = vsyncpa %s14, 0
    loop: start=0, step=1, limit=4
    $region2: #{tpu_custom_call.1} parent=1 // loop_pre_header
      _
    $region3: #{tpu_custom_call.1} parent=1 // loop_header
      %s17 = sphi 0, %s21
      %p18 = scmp.ge.s32.totalorder %s17, 4
      %s24 = sphi 0, %s36
      %s25 = sphi 0, %s32
      %s26 = sphi 0, %s24
      %s27 = sphi 0, %s25
      %s28 = sphi 0, %s26
      %s29 = sphi 0, %s27
      %s41 = sphi 0, %s43
      %s44 = sphi 0, %s41
      %s45 = sphi 0, %s44
      %s61 = sphi 0, %s45
      %s65 = sphi 0, %s65
      %s67 = sphi 0, %s65
      %s68 = sphi 0, %s67
      %s82 = sphi 0, %s68
      %s86 = sphi 0, %s86
      %s88 = sphi 0, %s86
      %s89 = sphi 0, %s88
      %s103 = sphi 0, %s89
      %s107 = sphi 0, %s107
      %s109 = sphi 0, %s107
      %s110 = sphi 0, %s109
      %s124 = sphi 0, %s110
      %s130 = sphi 0, %s132
      %s133 = sphi 0, %s130
      %s134 = sphi 0, %s133
      %s150 = sphi 0, %s134
    $region4: #{tpu_custom_call.1} parent=1 // loop_header_branch
      %20 = sbr.rel (%p18) target = $region8
    $region5: #{tpu_custom_call.1} parent=1 // loop_body
      %s22 = ssub.s32 %s17, 1
      %s23 = ssub.s32 %s17, 2
      %s30 = sadd.s32 1, %s25
      %p31 = scmp.ge.s32.totalorder %s30, 1
      %s32 = scalar_select %p31, 0, %s30
      %s33 = sadd.s32 1, %s24
      %s34 = scalar_select %p31, %s33, %s24
      %p35 = scmp.ge.s32.totalorder %s34, 2
      %s36 = scalar_select %p35, 0, %s34
      %s37 = ssub.s32 %s24, %s36
      %s38 = ssub.s32 %s25, %s32
      %s39 = sor.u32 %s37, %s38
      %p40 = scmp.eq.s32.totalorder %s39, 0
      %s42 = sadd.s32 %s41, 1
      %s43 = scalar_select %p40, %s41, %s42
      %p46 = pneg %p40
      %p47 = scmp.eq.s32.totalorder %s17, 1
      %p48 = por %p46, %p47
      %p49 = scmp.ne.s32.totalorder %s41, %s44
      %p50 = scmp.eq.s32.totalorder %s17, 0
      %p51 = por %p49, %p50
      %p52 = scmp.ne.s32.totalorder %s41, %s44
      %p53 = scmp.eq.s32.totalorder %s22, 1
      %p54 = por %p52, %p53
      %p55 = scmp.ne.s32.totalorder %s44, %s45
      %p56 = scmp.eq.s32.totalorder %s22, 0
      %p57 = por %p55, %p56
      %p58 = scmp.ne.s32.totalorder %s44, %s45
      %p59 = scmp.eq.s32.totalorder %s23, 1
      %p60 = por %p58, %p59
      %p62 = scmp.ne.s32.totalorder %s45, %s61
      %p63 = scmp.eq.s32.totalorder %s23, 0
      %p64 = por %p62, %p63
      %s66 = sadd.s32 %s65, 1
      %p69 = scmp.eq.s32.totalorder %s17, 1
      %p70 = scmp.ne.s32.totalorder %s65, %s67
      %p71 = scmp.eq.s32.totalorder %s17, 0
      %p72 = por %p70, %p71
      %p73 = scmp.ne.s32.totalorder %s65, %s67
      %p74 = scmp.eq.s32.totalorder %s22, 1
      %p75 = por %p73, %p74
      %p76 = scmp.ne.s32.totalorder %s67, %s68
      %p77 = scmp.eq.s32.totalorder %s22, 0
      %p78 = por %p76, %p77
      %p79 = scmp.ne.s32.totalorder %s67, %s68
      %p80 = scmp.eq.s32.totalorder %s23, 1
      %p81 = por %p79, %p80
      %p83 = scmp.ne.s32.totalorder %s68, %s82
      %p84 = scmp.eq.s32.totalorder %s23, 0
      %p85 = por %p83, %p84
      %s87 = sadd.s32 %s86, 1
      %p90 = scmp.eq.s32.totalorder %s17, 1
      %p91 = scmp.ne.s32.totalorder %s86, %s88
      %p92 = scmp.eq.s32.totalorder %s17, 0
      %p93 = por %p91, %p92
      %p94 = scmp.ne.s32.totalorder %s86, %s88
      %p95 = scmp.eq.s32.totalorder %s22, 1
      %p96 = por %p94, %p95
      %p97 = scmp.ne.s32.totalorder %s88, %s89
      %p98 = scmp.eq.s32.totalorder %s22, 0
      %p99 = por %p97, %p98
      %p100 = scmp.ne.s32.totalorder %s88, %s89
      %p101 = scmp.eq.s32.totalorder %s23, 1
      %p102 = por %p100, %p101
      %p104 = scmp.ne.s32.totalorder %s89, %s103
      %p105 = scmp.eq.s32.totalorder %s23, 0
      %p106 = por %p104, %p105
      %s108 = sadd.s32 %s107, 1
      %p111 = scmp.eq.s32.totalorder %s17, 1
      %p112 = scmp.ne.s32.totalorder %s107, %s109
      %p113 = scmp.eq.s32.totalorder %s17, 0
      %p114 = por %p112, %p113
      %p115 = scmp.ne.s32.totalorder %s107, %s109
      %p116 = scmp.eq.s32.totalorder %s22, 1
      %p117 = por %p115, %p116
      %p118 = scmp.ne.s32.totalorder %s109, %s110
      %p119 = scmp.eq.s32.totalorder %s22, 0
      %p120 = por %p118, %p119
      %p121 = scmp.ne.s32.totalorder %s109, %s110
      %p122 = scmp.eq.s32.totalorder %s23, 1
      %p123 = por %p121, %p122
      %p125 = scmp.ne.s32.totalorder %s110, %s124
      %p126 = scmp.eq.s32.totalorder %s23, 0
      %p127 = por %p125, %p126
      %s128 = ssub.s32 %s24, %s36
      %p129 = scmp.eq.s32.totalorder %s128, 0
      %s131 = sadd.s32 %s130, 1
      %s132 = scalar_select %p129, %s130, %s131
      %p135 = pneg %p129
      %p136 = scmp.eq.s32.totalorder %s17, 1
      %p137 = por %p135, %p136
      %p138 = scmp.ne.s32.totalorder %s130, %s133
      %p139 = scmp.eq.s32.totalorder %s17, 0
      %p140 = por %p138, %p139
      %p141 = scmp.ne.s32.totalorder %s130, %s133
      %p142 = scmp.eq.s32.totalorder %s22, 1
      %p143 = por %p141, %p142
      %p144 = scmp.ne.s32.totalorder %s133, %s134
      %p145 = scmp.eq.s32.totalorder %s22, 0
      %p146 = por %p144, %p145
      %p147 = scmp.ne.s32.totalorder %s133, %s134
      %p148 = scmp.eq.s32.totalorder %s23, 1
      %p149 = por %p147, %p148
      %p151 = scmp.ne.s32.totalorder %s134, %s150
      %p152 = scmp.eq.s32.totalorder %s23, 0
      %p153 = por %p151, %p152
      %p154 = scmp.le.s32.totalorder 1, %s17
      %p155 = scmp.lt.s32.totalorder %s17, 3
      %p156 = pnand %p154, %p155
      %p157 = pneg %p156
      // Predicated region
      $region9: #{tpu_custom_call.1} parent=5 // pred_check
        _
      $region10: #{tpu_custom_call.1} parent=5 // pred_check_branch
        %159 = sbr.rel (%p156) target = $region12
      $region11: #{tpu_custom_call.1} parent=5 // pred_region
        %s160 = ssub.s32 %s17, 1
        // Predicated region
        $region13: #{tpu_custom_call.1} parent=11 // pred_check
          %p161 = pneg %p78
        $region14: #{tpu_custom_call.1} parent=11 // pred_check_branch
          %163 = sbr.rel (%p161) target = $region16
        $region15: #{tpu_custom_call.1} parent=11 // pred_region
          %165 = vsyncadd [#allocation7], 0
          %s166 = sshll.u32 %s1, 4
          %s167 = int_to_ptr.hbm [resolvable:$true] %s166
          %s168 = sshll.u32 [#allocation6], 4
          %s169 = int_to_ptr.vmem [resolvable:$true] %s168
          %174 = dma.hbm_to_vmem [thread:$0]  %s167, 4096, %s169, [#allocation7], 64, 64, 4
        $region16: #{tpu_custom_call.1} parent=11 // pred_fallthru
          _
        // Predicated region
        $region17: #{tpu_custom_call.1} parent=11 // pred_check
          %p175 = pneg %p99
        $region18: #{tpu_custom_call.1} parent=11 // pred_check_branch
          %177 = sbr.rel (%p175) target = $region20
        $region19: #{tpu_custom_call.1} parent=11 // pred_region
          %179 = vsyncadd [#allocation7], 0
          %s180 = sshll.u32 %s2, 4
          %s181 = int_to_ptr.hbm [resolvable:$true] %s180
          %s182 = sshll.u32 [#allocation8], 4
          %s183 = int_to_ptr.vmem [resolvable:$true] %s182
          %188 = dma.hbm_to_vmem [thread:$0]  %s181, 2048, %s183, [#allocation7], 128, 128, 8
        $region20: #{tpu_custom_call.1} parent=11 // pred_fallthru
          _
        // Predicated region
        $region21: #{tpu_custom_call.1} parent=11 // pred_check
          %p189 = pneg %p120
        $region22: #{tpu_custom_call.1} parent=11 // pred_check_branch
          %191 = sbr.rel (%p189) target = $region24
        $region23: #{tpu_custom_call.1} parent=11 // pred_region
          _
        $region24: #{tpu_custom_call.1} parent=11 // pred_fallthru
          _
      $region12: #{tpu_custom_call.1} parent=5 // pred_fallthru
        _
      %p192 = scmp.lt.s32.totalorder %s17, 2
      // Predicated region
      $region25: #{tpu_custom_call.1} parent=5 // pred_check
        %p193 = pneg %p192
      $region26: #{tpu_custom_call.1} parent=5 // pred_check_branch
        %195 = sbr.rel (%p193) target = $region28
      $region27: #{tpu_custom_call.1} parent=5 // pred_region
        // Predicated region
        $region29: #{tpu_custom_call.1} parent=27 // pred_check
          %p196 = pneg %p51
        $region30: #{tpu_custom_call.1} parent=27 // pred_check_branch
          %198 = sbr.rel (%p196) target = $region32
        $region31: #{tpu_custom_call.1} parent=27 // pred_region
          %s199 = sand.u32 %s41, 1
          %s200 = scalar_lea.sflag [#allocation4], %s199
          %s201 = sand.u32 %s41, 1
          %s202 = smul.addr %s201, 512
          %s203 = scalar_lea.vmem [#allocation3], %s202
          %s204 = smul.u32 32, %s24
          %s205 = smul.u32 4, %s25
          %207 = vsyncadd %s200, 0
          %s208 = smul.addr %s204, 4
          %s209 = sadd.s32 %s205, %s208
          %s210 = smul.addr %s209, 4
          %s211 = scalar_lea.hbm %s0, %s210
          %s212 = sshll.u32 %s211, 4
          %s213 = int_to_ptr.hbm [resolvable:$true] %s212
          %s214 = sshll.u32 %s203, 4
          %s215 = int_to_ptr.vmem [resolvable:$true] %s214
          %220 = dma.hbm_to_vmem [thread:$0]  %s213, 8192, %s215, %s200, 256, 256, 16
        $region32: #{tpu_custom_call.1} parent=27 // pred_fallthru
          _
      $region28: #{tpu_custom_call.1} parent=5 // pred_fallthru
        _
      %p221 = scmp.le.s32.totalorder 1, %s17
      %p222 = scmp.lt.s32.totalorder %s17, 3
      %p223 = pnand %p221, %p222
      %p224 = pneg %p223
      // Predicated region
      $region33: #{tpu_custom_call.1} parent=5 // pred_check
        _
      $region34: #{tpu_custom_call.1} parent=5 // pred_check_branch
        %226 = sbr.rel (%p223) target = $region36
      $region35: #{tpu_custom_call.1} parent=5 // pred_region
        %s227 = ssub.s32 %s17, 1
        %s228 = sand.u32 %s44, 1
        %s229 = scalar_lea.sflag [#allocation4], %s228
        %s230 = sand.u32 %s44, 1
        %s231 = smul.addr %s230, 512
        %s232 = scalar_lea.vmem [#allocation3], %s231
        // Predicated region
        $region37: #{tpu_custom_call.1} parent=35 // pred_check
          %p233 = pneg %p57
        $region38: #{tpu_custom_call.1} parent=35 // pred_check_branch
          %235 = sbr.rel (%p233) target = $region40
        $region39: #{tpu_custom_call.1} parent=35 // pred_region
          %237 = dma.done %s229, 8192
        $region40: #{tpu_custom_call.1} parent=35 // pred_fallthru
          _
        // Predicated region
        $region41: #{tpu_custom_call.1} parent=35 // pred_check
          %p238 = pneg %p78
        $region42: #{tpu_custom_call.1} parent=35 // pred_check_branch
          %240 = sbr.rel (%p238) target = $region44
        $region43: #{tpu_custom_call.1} parent=35 // pred_region
          %242 = dma.done [#allocation7], 4096
        $region44: #{tpu_custom_call.1} parent=35 // pred_fallthru
          _
        // Predicated region
        $region45: #{tpu_custom_call.1} parent=35 // pred_check
          %p243 = pneg %p99
        $region46: #{tpu_custom_call.1} parent=35 // pred_check_branch
          %245 = sbr.rel (%p243) target = $region48
        $region47: #{tpu_custom_call.1} parent=35 // pred_region
          %247 = dma.done [#allocation7], 2048
        $region48: #{tpu_custom_call.1} parent=35 // pred_fallthru
          _
        %s248 = sand.u32 %s44, 1
        %s249 = scalar_lea.sflag [#allocation4], %s248
        %s250 = sand.u32 %s44, 1
        %s251 = smul.addr %s250, 512
        %s252 = scalar_lea.vmem [#allocation3], %s251
        %p253 = pneg %p57
        %p254 = pneg %p54
        %p255 = pneg %p78
        %p256 = pneg %p75
        %p257 = pneg %p99
        %p258 = pneg %p96
        %p259 = pneg %p120
        %p260 = pneg %p117
        %p261 = pneg %p146
        %p262 = pneg %p143
        %s263 = sand.u32 %s133, 1
        %s264 = scalar_lea.sflag [#allocation5], %s263
        %s265 = sand.u32 %s133, 1
        %s266 = smul.addr %s265, 256
        %s267 = scalar_lea.vmem [#allocation9], %s266
        %s268 = smul.u32 32, %s26
        %s269 = smul.u32 4, %s27
        %s270 = smul.u32 32, %s26
        %p271 = scmp.eq.s32.totalorder %s27, 0
        // Predicated region
        $region49: #{tpu_custom_call.1} parent=35 // pred_check
          %p272 = pneg %p271
        $region50: #{tpu_custom_call.1} parent=35 // pred_check_branch
          %274 = sbr.rel (%p272) target = $region52
        $region51: #{tpu_custom_call.1} parent=35 // pred_region
          %275 = vst [vmem:[#allocation2] sm:$0xff] 0.0
          %276 = vst [vmem:[#allocation2 + $0x8] sm:$0xff] 0.0
          %277 = vst [vmem:[#allocation2 + $0x10] sm:$0xff] 0.0
          %278 = vst [vmem:[#allocation2 + $0x18] sm:$0xff] 0.0
          %279 = vst [vmem:[#allocation2 + $0x20] sm:$0xff] 0.0
          %280 = vst [vmem:[#allocation2 + $0x28] sm:$0xff] 0.0
          %281 = vst [vmem:[#allocation2 + $0x30] sm:$0xff] 0.0
          %282 = vst [vmem:[#allocation2 + $0x38] sm:$0xff] 0.0
          %283 = vst [vmem:[#allocation2 + $0x40] sm:$0xff] 0.0
          %284 = vst [vmem:[#allocation2 + $0x48] sm:$0xff] 0.0
          %285 = vst [vmem:[#allocation2 + $0x50] sm:$0xff] 0.0
          %286 = vst [vmem:[#allocation2 + $0x58] sm:$0xff] 0.0
          %287 = vst [vmem:[#allocation2 + $0x60] sm:$0xff] 0.0
          %288 = vst [vmem:[#allocation2 + $0x68] sm:$0xff] 0.0
          %289 = vst [vmem:[#allocation2 + $0x70] sm:$0xff] 0.0
          %290 = vst [vmem:[#allocation2 + $0x78] sm:$0xff] 0.0
          %291 = vst [vmem:[#allocation2 + $0x80] sm:$0xff] 0.0
          %292 = vst [vmem:[#allocation2 + $0x88] sm:$0xff] 0.0
          %293 = vst [vmem:[#allocation2 + $0x90] sm:$0xff] 0.0
          %294 = vst [vmem:[#allocation2 + $0x98] sm:$0xff] 0.0
          %295 = vst [vmem:[#allocation2 + $0xa0] sm:$0xff] 0.0
          %296 = vst [vmem:[#allocation2 + $0xa8] sm:$0xff] 0.0
          %297 = vst [vmem:[#allocation2 + $0xb0] sm:$0xff] 0.0
          %298 = vst [vmem:[#allocation2 + $0xb8] sm:$0xff] 0.0
          %299 = vst [vmem:[#allocation2 + $0xc0] sm:$0xff] 0.0
          %300 = vst [vmem:[#allocation2 + $0xc8] sm:$0xff] 0.0
          %301 = vst [vmem:[#allocation2 + $0xd0] sm:$0xff] 0.0
          %302 = vst [vmem:[#allocation2 + $0xd8] sm:$0xff] 0.0
          %303 = vst [vmem:[#allocation2 + $0xe0] sm:$0xff] 0.0
          %304 = vst [vmem:[#allocation2 + $0xe8] sm:$0xff] 0.0
          %305 = vst [vmem:[#allocation2 + $0xf0] sm:$0xff] 0.0
          %306 = vst [vmem:[#allocation2 + $0xf8] sm:$0xff] 0.0
        $region52: #{tpu_custom_call.1} parent=35 // pred_fallthru
          _
        %v307 = vld [vmem:[%s232] sm:$0xff]
        %v308 = vld [vmem:[%s232 + $0x8] sm:$0xff]
        %v309 = vld [vmem:[%s232 + $0x10] sm:$0xff]
        %v310 = vld [vmem:[%s232 + $0x18] sm:$0xff]
        %v311 = vld [vmem:[%s232 + $0x20] sm:$0xff]
        %v312 = vld [vmem:[%s232 + $0x28] sm:$0xff]
        %v313 = vld [vmem:[%s232 + $0x30] sm:$0xff]
        %v314 = vld [vmem:[%s232 + $0x38] sm:$0xff]
        %v315 = vld [vmem:[%s232 + $0x40] sm:$0xff]
        %v316 = vld [vmem:[%s232 + $0x48] sm:$0xff]
        %v317 = vld [vmem:[%s232 + $0x50] sm:$0xff]
        %v318 = vld [vmem:[%s232 + $0x58] sm:$0xff]
        %v319 = vld [vmem:[%s232 + $0x60] sm:$0xff]
        %v320 = vld [vmem:[%s232 + $0x68] sm:$0xff]
        %v321 = vld [vmem:[%s232 + $0x70] sm:$0xff]
        %v322 = vld [vmem:[%s232 + $0x78] sm:$0xff]
        %v323 = vld [vmem:[%s232 + $0x80] sm:$0xff]
        %v324 = vld [vmem:[%s232 + $0x88] sm:$0xff]
        %v325 = vld [vmem:[%s232 + $0x90] sm:$0xff]
        %v326 = vld [vmem:[%s232 + $0x98] sm:$0xff]
        %v327 = vld [vmem:[%s232 + $0xa0] sm:$0xff]
        %v328 = vld [vmem:[%s232 + $0xa8] sm:$0xff]
        %v329 = vld [vmem:[%s232 + $0xb0] sm:$0xff]
        %v330 = vld [vmem:[%s232 + $0xb8] sm:$0xff]
        %v331 = vld [vmem:[%s232 + $0xc0] sm:$0xff]
        %v332 = vld [vmem:[%s232 + $0xc8] sm:$0xff]
        %v333 = vld [vmem:[%s232 + $0xd0] sm:$0xff]
        %v334 = vld [vmem:[%s232 + $0xd8] sm:$0xff]
        %v335 = vld [vmem:[%s232 + $0xe0] sm:$0xff]
        %v336 = vld [vmem:[%s232 + $0xe8] sm:$0xff]
        %v337 = vld [vmem:[%s232 + $0xf0] sm:$0xff]
        %v338 = vld [vmem:[%s232 + $0xf8] sm:$0xff]
        %v339 = vld [vmem:[%s232 + $0x100] sm:$0xff]
        %v340 = vld [vmem:[%s232 + $0x108] sm:$0xff]
        %v341 = vld [vmem:[%s232 + $0x110] sm:$0xff]
        %v342 = vld [vmem:[%s232 + $0x118] sm:$0xff]
        %v343 = vld [vmem:[%s232 + $0x120] sm:$0xff]
        %v344 = vld [vmem:[%s232 + $0x128] sm:$0xff]
        %v345 = vld [vmem:[%s232 + $0x130] sm:$0xff]
        %v346 = vld [vmem:[%s232 + $0x138] sm:$0xff]
        %v347 = vld [vmem:[%s232 + $0x140] sm:$0xff]
        %v348 = vld [vmem:[%s232 + $0x148] sm:$0xff]
        %v349 = vld [vmem:[%s232 + $0x150] sm:$0xff]
        %v350 = vld [vmem:[%s232 + $0x158] sm:$0xff]
        %v351 = vld [vmem:[%s232 + $0x160] sm:$0xff]
        %v352 = vld [vmem:[%s232 + $0x168] sm:$0xff]
        %v353 = vld [vmem:[%s232 + $0x170] sm:$0xff]
        %v354 = vld [vmem:[%s232 + $0x178] sm:$0xff]
        %v355 = vld [vmem:[%s232 + $0x180] sm:$0xff]
        %v356 = vld [vmem:[%s232 + $0x188] sm:$0xff]
        %v357 = vld [vmem:[%s232 + $0x190] sm:$0xff]
        %v358 = vld [vmem:[%s232 + $0x198] sm:$0xff]
        %v359 = vld [vmem:[%s232 + $0x1a0] sm:$0xff]
        %v360 = vld [vmem:[%s232 + $0x1a8] sm:$0xff]
        %v361 = vld [vmem:[%s232 + $0x1b0] sm:$0xff]
        %v362 = vld [vmem:[%s232 + $0x1b8] sm:$0xff]
        %v363 = vld [vmem:[%s232 + $0x1c0] sm:$0xff]
        %v364 = vld [vmem:[%s232 + $0x1c8] sm:$0xff]
        %v365 = vld [vmem:[%s232 + $0x1d0] sm:$0xff]
        %v366 = vld [vmem:[%s232 + $0x1d8] sm:$0xff]
        %v367 = vld [vmem:[%s232 + $0x1e0] sm:$0xff]
        %v368 = vld [vmem:[%s232 + $0x1e8] sm:$0xff]
        %v369 = vld [vmem:[%s232 + $0x1f0] sm:$0xff]
        %v370 = vld [vmem:[%s232 + $0x1f8] sm:$0xff]
        %s371 = smul.u32 %s27, 512
        %s372 = sshra.s32 %s371, 3
        %s373 = sand.u32 %s371, 7
        %s374 = smul.addr %s372, 4
        %s375 = scalar_lea.vmem [#allocation6], %s374
        %v376 = vld [vmem:[%s375] sm:$0xf]
        %v377 = vld [vmem:[%s375 + $0x4] sm:$0xf]
        %v378 = vld [vmem:[%s375 + $0x8] sm:$0xf]
        %v379 = vld [vmem:[%s375 + $0xc] sm:$0xf]
        %v380 = vld [vmem:[%s375 + $0x10] sm:$0xf]
        %v381 = vld [vmem:[%s375 + $0x14] sm:$0xf]
        %v382 = vld [vmem:[%s375 + $0x18] sm:$0xf]
        %v383 = vld [vmem:[%s375 + $0x1c] sm:$0xf]
        %v384 = vld [vmem:[%s375 + $0x20] sm:$0xf]
        %v385 = vld [vmem:[%s375 + $0x24] sm:$0xf]
        %v386 = vld [vmem:[%s375 + $0x28] sm:$0xf]
        %v387 = vld [vmem:[%s375 + $0x2c] sm:$0xf]
        %v388 = vld [vmem:[%s375 + $0x30] sm:$0xf]
        %v389 = vld [vmem:[%s375 + $0x34] sm:$0xf]
        %v390 = vld [vmem:[%s375 + $0x38] sm:$0xf]
        %v391 = vld [vmem:[%s375 + $0x3c] sm:$0xf]
        %v392 = vld [vmem:[%s375 + $0x40] sm:$0xf]
        %v393 = vld [vmem:[%s375 + $0x44] sm:$0xf]
        %v394 = vld [vmem:[%s375 + $0x48] sm:$0xf]
        %v395 = vld [vmem:[%s375 + $0x4c] sm:$0xf]
        %v396 = vld [vmem:[%s375 + $0x50] sm:$0xf]
        %v397 = vld [vmem:[%s375 + $0x54] sm:$0xf]
        %v398 = vld [vmem:[%s375 + $0x58] sm:$0xf]
        %v399 = vld [vmem:[%s375 + $0x5c] sm:$0xf]
        %v400 = vld [vmem:[%s375 + $0x60] sm:$0xf]
        %v401 = vld [vmem:[%s375 + $0x64] sm:$0xf]
        %v402 = vld [vmem:[%s375 + $0x68] sm:$0xf]
        %v403 = vld [vmem:[%s375 + $0x6c] sm:$0xf]
        %v404 = vld [vmem:[%s375 + $0x70] sm:$0xf]
        %v405 = vld [vmem:[%s375 + $0x74] sm:$0xf]
        %v406 = vld [vmem:[%s375 + $0x78] sm:$0xf]
        %v407 = vld [vmem:[%s375 + $0x7c] sm:$0xf]
        %v408 = vld [vmem:[%s375 + $0x80] sm:$0xf]
        %v409 = vld [vmem:[%s375 + $0x84] sm:$0xf]
        %v410 = vld [vmem:[%s375 + $0x88] sm:$0xf]
        %v411 = vld [vmem:[%s375 + $0x8c] sm:$0xf]
        %v412 = vld [vmem:[%s375 + $0x90] sm:$0xf]
        %v413 = vld [vmem:[%s375 + $0x94] sm:$0xf]
        %v414 = vld [vmem:[%s375 + $0x98] sm:$0xf]
        %v415 = vld [vmem:[%s375 + $0x9c] sm:$0xf]
        %v416 = vld [vmem:[%s375 + $0xa0] sm:$0xf]
        %v417 = vld [vmem:[%s375 + $0xa4] sm:$0xf]
        %v418 = vld [vmem:[%s375 + $0xa8] sm:$0xf]
        %v419 = vld [vmem:[%s375 + $0xac] sm:$0xf]
        %v420 = vld [vmem:[%s375 + $0xb0] sm:$0xf]
        %v421 = vld [vmem:[%s375 + $0xb4] sm:$0xf]
        %v422 = vld [vmem:[%s375 + $0xb8] sm:$0xf]
        %v423 = vld [vmem:[%s375 + $0xbc] sm:$0xf]
        %v424 = vld [vmem:[%s375 + $0xc0] sm:$0xf]
        %v425 = vld [vmem:[%s375 + $0xc4] sm:$0xf]
        %v426 = vld [vmem:[%s375 + $0xc8] sm:$0xf]
        %v427 = vld [vmem:[%s375 + $0xcc] sm:$0xf]
        %v428 = vld [vmem:[%s375 + $0xd0] sm:$0xf]
        %v429 = vld [vmem:[%s375 + $0xd4] sm:$0xf]
        %v430 = vld [vmem:[%s375 + $0xd8] sm:$0xf]
        %v431 = vld [vmem:[%s375 + $0xdc] sm:$0xf]
        %v432 = vld [vmem:[%s375 + $0xe0] sm:$0xf]
        %v433 = vld [vmem:[%s375 + $0xe4] sm:$0xf]
        %v434 = vld [vmem:[%s375 + $0xe8] sm:$0xf]
        %v435 = vld [vmem:[%s375 + $0xec] sm:$0xf]
        %v436 = vld [vmem:[%s375 + $0xf0] sm:$0xf]
        %v437 = vld [vmem:[%s375 + $0xf4] sm:$0xf]
        %v438 = vld [vmem:[%s375 + $0xf8] sm:$0xf]
        %v439 = vld [vmem:[%s375 + $0xfc] sm:$0xf]
        %v440 = vld [vmem:[#allocation2] sm:$0xff]
        %v441 = vld [vmem:[#allocation2 + $0x8] sm:$0xff]
        %v442 = vld [vmem:[#allocation2 + $0x10] sm:$0xff]
        %v443 = vld [vmem:[#allocation2 + $0x18] sm:$0xff]
        %v444 = vld [vmem:[#allocation2 + $0x20] sm:$0xff]
        %v445 = vld [vmem:[#allocation2 + $0x28] sm:$0xff]
        %v446 = vld [vmem:[#allocation2 + $0x30] sm:$0xff]
        %v447 = vld [vmem:[#allocation2 + $0x38] sm:$0xff]
        %v448 = vld [vmem:[#allocation2 + $0x40] sm:$0xff]
        %v449 = vld [vmem:[#allocation2 + $0x48] sm:$0xff]
        %v450 = vld [vmem:[#allocation2 + $0x50] sm:$0xff]
        %v451 = vld [vmem:[#allocation2 + $0x58] sm:$0xff]
        %v452 = vld [vmem:[#allocation2 + $0x60] sm:$0xff]
        %v453 = vld [vmem:[#allocation2 + $0x68] sm:$0xff]
        %v454 = vld [vmem:[#allocation2 + $0x70] sm:$0xff]
        %v455 = vld [vmem:[#allocation2 + $0x78] sm:$0xff]
        %v456 = vld [vmem:[#allocation2 + $0x80] sm:$0xff]
        %v457 = vld [vmem:[#allocation2 + $0x88] sm:$0xff]
        %v458 = vld [vmem:[#allocation2 + $0x90] sm:$0xff]
        %v459 = vld [vmem:[#allocation2 + $0x98] sm:$0xff]
        %v460 = vld [vmem:[#allocation2 + $0xa0] sm:$0xff]
        %v461 = vld [vmem:[#allocation2 + $0xa8] sm:$0xff]
        %v462 = vld [vmem:[#allocation2 + $0xb0] sm:$0xff]
        %v463 = vld [vmem:[#allocation2 + $0xb8] sm:$0xff]
        %v464 = vld [vmem:[#allocation2 + $0xc0] sm:$0xff]
        %v465 = vld [vmem:[#allocation2 + $0xc8] sm:$0xff]
        %v466 = vld [vmem:[#allocation2 + $0xd0] sm:$0xff]
        %v467 = vld [vmem:[#allocation2 + $0xd8] sm:$0xff]
        %v468 = vld [vmem:[#allocation2 + $0xe0] sm:$0xff]
        %v469 = vld [vmem:[#allocation2 + $0xe8] sm:$0xff]
        %v470 = vld [vmem:[#allocation2 + $0xf0] sm:$0xff]
        %v471 = vld [vmem:[#allocation2 + $0xf8] sm:$0xff]
        %v536 = vunpack.c.l.b16 %v307
        %v537 = vunpack.c.h.b16 %v307
        %v538 = vunpack.c.l.b16 %v308
        %v539 = vunpack.c.h.b16 %v308
        %v540 = vunpack.c.l.b16 %v309
        %v541 = vunpack.c.h.b16 %v309
        %v542 = vunpack.c.l.b16 %v310
        %v543 = vunpack.c.h.b16 %v310
        %v544 = vunpack.c.l.b16 %v311
        %v545 = vunpack.c.h.b16 %v311
        %v546 = vunpack.c.l.b16 %v312
        %v547 = vunpack.c.h.b16 %v312
        %v548 = vunpack.c.l.b16 %v313
        %v549 = vunpack.c.h.b16 %v313
        %v550 = vunpack.c.l.b16 %v314
        %v551 = vunpack.c.h.b16 %v314
        %v552 = vunpack.c.l.b16 %v315
        %v553 = vunpack.c.h.b16 %v315
        %v554 = vunpack.c.l.b16 %v316
        %v555 = vunpack.c.h.b16 %v316
        %v556 = vunpack.c.l.b16 %v317
        %v557 = vunpack.c.h.b16 %v317
        %v558 = vunpack.c.l.b16 %v318
        %v559 = vunpack.c.h.b16 %v318
        %v560 = vunpack.c.l.b16 %v319
        %v561 = vunpack.c.h.b16 %v319
        %v562 = vunpack.c.l.b16 %v320
        %v563 = vunpack.c.h.b16 %v320
        %v564 = vunpack.c.l.b16 %v321
        %v565 = vunpack.c.h.b16 %v321
        %v566 = vunpack.c.l.b16 %v322
        %v567 = vunpack.c.h.b16 %v322
        %v568 = vunpack.c.l.b16 %v323
        %v569 = vunpack.c.h.b16 %v323
        %v570 = vunpack.c.l.b16 %v324
        %v571 = vunpack.c.h.b16 %v324
        %v572 = vunpack.c.l.b16 %v325
        %v573 = vunpack.c.h.b16 %v325
        %v574 = vunpack.c.l.b16 %v326
        %v575 = vunpack.c.h.b16 %v326
        %v576 = vunpack.c.l.b16 %v327
        %v577 = vunpack.c.h.b16 %v327
        %v578 = vunpack.c.l.b16 %v328
        %v579 = vunpack.c.h.b16 %v328
        %v580 = vunpack.c.l.b16 %v329
        %v581 = vunpack.c.h.b16 %v329
        %v582 = vunpack.c.l.b16 %v330
        %v583 = vunpack.c.h.b16 %v330
        %v584 = vunpack.c.l.b16 %v331
        %v585 = vunpack.c.h.b16 %v331
        %v586 = vunpack.c.l.b16 %v332
        %v587 = vunpack.c.h.b16 %v332
        %v588 = vunpack.c.l.b16 %v333
        %v589 = vunpack.c.h.b16 %v333
        %v590 = vunpack.c.l.b16 %v334
        %v591 = vunpack.c.h.b16 %v334
        %v592 = vunpack.c.l.b16 %v335
        %v593 = vunpack.c.h.b16 %v335
        %v594 = vunpack.c.l.b16 %v336
        %v595 = vunpack.c.h.b16 %v336
        %v596 = vunpack.c.l.b16 %v337
        %v597 = vunpack.c.h.b16 %v337
        %v598 = vunpack.c.l.b16 %v338
        %v599 = vunpack.c.h.b16 %v338
        %v600 = vunpack.c.l.b16 %v339
        %v601 = vunpack.c.h.b16 %v339
        %v602 = vunpack.c.l.b16 %v340
        %v603 = vunpack.c.h.b16 %v340
        %v604 = vunpack.c.l.b16 %v341
        %v605 = vunpack.c.h.b16 %v341
        %v606 = vunpack.c.l.b16 %v342
        %v607 = vunpack.c.h.b16 %v342
        %v608 = vunpack.c.l.b16 %v343
        %v609 = vunpack.c.h.b16 %v343
        %v610 = vunpack.c.l.b16 %v344
        %v611 = vunpack.c.h.b16 %v344
        %v612 = vunpack.c.l.b16 %v345
        %v613 = vunpack.c.h.b16 %v345
        %v614 = vunpack.c.l.b16 %v346
        %v615 = vunpack.c.h.b16 %v346
        %v616 = vunpack.c.l.b16 %v347
        %v617 = vunpack.c.h.b16 %v347
        %v618 = vunpack.c.l.b16 %v348
        %v619 = vunpack.c.h.b16 %v348
        %v620 = vunpack.c.l.b16 %v349
        %v621 = vunpack.c.h.b16 %v349
        %v622 = vunpack.c.l.b16 %v350
        %v623 = vunpack.c.h.b16 %v350
        %v624 = vunpack.c.l.b16 %v351
        %v625 = vunpack.c.h.b16 %v351
        %v626 = vunpack.c.l.b16 %v352
        %v627 = vunpack.c.h.b16 %v352
        %v628 = vunpack.c.l.b16 %v353
        %v629 = vunpack.c.h.b16 %v353
        %v630 = vunpack.c.l.b16 %v354
        %v631 = vunpack.c.h.b16 %v354
        %v632 = vunpack.c.l.b16 %v355
        %v633 = vunpack.c.h.b16 %v355
        %v634 = vunpack.c.l.b16 %v356
        %v635 = vunpack.c.h.b16 %v356
        %v636 = vunpack.c.l.b16 %v357
        %v637 = vunpack.c.h.b16 %v357
        %v638 = vunpack.c.l.b16 %v358
        %v639 = vunpack.c.h.b16 %v358
        %v640 = vunpack.c.l.b16 %v359
        %v641 = vunpack.c.h.b16 %v359
        %v642 = vunpack.c.l.b16 %v360
        %v643 = vunpack.c.h.b16 %v360
        %v644 = vunpack.c.l.b16 %v361
        %v645 = vunpack.c.h.b16 %v361
        %v646 = vunpack.c.l.b16 %v362
        %v647 = vunpack.c.h.b16 %v362
        %v648 = vunpack.c.l.b16 %v363
        %v649 = vunpack.c.h.b16 %v363
        %v650 = vunpack.c.l.b16 %v364
        %v651 = vunpack.c.h.b16 %v364
        %v652 = vunpack.c.l.b16 %v365
        %v653 = vunpack.c.h.b16 %v365
        %v654 = vunpack.c.l.b16 %v366
        %v655 = vunpack.c.h.b16 %v366
        %v656 = vunpack.c.l.b16 %v367
        %v657 = vunpack.c.h.b16 %v367
        %v658 = vunpack.c.l.b16 %v368
        %v659 = vunpack.c.h.b16 %v368
        %v660 = vunpack.c.l.b16 %v369
        %v661 = vunpack.c.h.b16 %v369
        %v662 = vunpack.c.l.b16 %v370
        %v663 = vunpack.c.h.b16 %v370
        %v664 = vpack.c.b16 %v540, %v536
        %v665 = vpack.c.b16 %v541, %v537
        %v666 = vpack.c.b16 %v542, %v538
        %v667 = vpack.c.b16 %v543, %v539
        %v668 = vpack.c.b16 %v548, %v544
        %v669 = vpack.c.b16 %v549, %v545
        %v670 = vpack.c.b16 %v550, %v546
        %v671 = vpack.c.b16 %v551, %v547
        %v672 = vpack.c.b16 %v556, %v552
        %v673 = vpack.c.b16 %v557, %v553
        %v674 = vpack.c.b16 %v558, %v554
        %v675 = vpack.c.b16 %v559, %v555
        %v676 = vpack.c.b16 %v564, %v560
        %v677 = vpack.c.b16 %v565, %v561
        %v678 = vpack.c.b16 %v566, %v562
        %v679 = vpack.c.b16 %v567, %v563
        %v680 = vpack.c.b16 %v572, %v568
        %v681 = vpack.c.b16 %v573, %v569
        %v682 = vpack.c.b16 %v574, %v570
        %v683 = vpack.c.b16 %v575, %v571
        %v684 = vpack.c.b16 %v580, %v576
        %v685 = vpack.c.b16 %v581, %v577
        %v686 = vpack.c.b16 %v582, %v578
        %v687 = vpack.c.b16 %v583, %v579
        %v688 = vpack.c.b16 %v588, %v584
        %v689 = vpack.c.b16 %v589, %v585
        %v690 = vpack.c.b16 %v590, %v586
        %v691 = vpack.c.b16 %v591, %v587
        %v692 = vpack.c.b16 %v596, %v592
        %v693 = vpack.c.b16 %v597, %v593
        %v694 = vpack.c.b16 %v598, %v594
        %v695 = vpack.c.b16 %v599, %v595
        %v696 = vpack.c.b16 %v604, %v600
        %v697 = vpack.c.b16 %v605, %v601
        %v698 = vpack.c.b16 %v606, %v602
        %v699 = vpack.c.b16 %v607, %v603
        %v700 = vpack.c.b16 %v612, %v608
        %v701 = vpack.c.b16 %v613, %v609
        %v702 = vpack.c.b16 %v614, %v610
        %v703 = vpack.c.b16 %v615, %v611
        %v704 = vpack.c.b16 %v620, %v616
        %v705 = vpack.c.b16 %v621, %v617
        %v706 = vpack.c.b16 %v622, %v618
        %v707 = vpack.c.b16 %v623, %v619
        %v708 = vpack.c.b16 %v628, %v624
        %v709 = vpack.c.b16 %v629, %v625
        %v710 = vpack.c.b16 %v630, %v626
        %v711 = vpack.c.b16 %v631, %v627
        %v712 = vpack.c.b16 %v636, %v632
        %v713 = vpack.c.b16 %v637, %v633
        %v714 = vpack.c.b16 %v638, %v634
        %v715 = vpack.c.b16 %v639, %v635
        %v716 = vpack.c.b16 %v644, %v640
        %v717 = vpack.c.b16 %v645, %v641
        %v718 = vpack.c.b16 %v646, %v642
        %v719 = vpack.c.b16 %v647, %v643
        %v720 = vpack.c.b16 %v652, %v648
        %v721 = vpack.c.b16 %v653, %v649
        %v722 = vpack.c.b16 %v654, %v650
        %v723 = vpack.c.b16 %v655, %v651
        %v724 = vpack.c.b16 %v660, %v656
        %v725 = vpack.c.b16 %v661, %v657
        %v726 = vpack.c.b16 %v662, %v658
        %v727 = vpack.c.b16 %v663, %v659
        %v856 = vunpack.c.l.b16 %v376
        %v857 = vunpack.c.l.b16 %v377
        %v858 = vunpack.c.l.b16 %v378
        %v859 = vunpack.c.l.b16 %v379
        %v860 = vunpack.c.l.b16 %v380
        %v861 = vunpack.c.l.b16 %v381
        %v862 = vunpack.c.l.b16 %v382
        %v863 = vunpack.c.l.b16 %v383
        %v864 = vunpack.c.l.b16 %v384
        %v865 = vunpack.c.l.b16 %v385
        %v866 = vunpack.c.l.b16 %v386
        %v867 = vunpack.c.l.b16 %v387
        %v868 = vunpack.c.l.b16 %v388
        %v869 = vunpack.c.l.b16 %v389
        %v870 = vunpack.c.l.b16 %v390
        %v871 = vunpack.c.l.b16 %v391
        %v872 = vunpack.c.l.b16 %v392
        %v873 = vunpack.c.l.b16 %v393
        %v874 = vunpack.c.l.b16 %v394
        %v875 = vunpack.c.l.b16 %v395
        %v876 = vunpack.c.l.b16 %v396
        %v877 = vunpack.c.l.b16 %v397
        %v878 = vunpack.c.l.b16 %v398
        %v879 = vunpack.c.l.b16 %v399
        %v880 = vunpack.c.l.b16 %v400
        %v881 = vunpack.c.l.b16 %v401
        %v882 = vunpack.c.l.b16 %v402
        %v883 = vunpack.c.l.b16 %v403
        %v884 = vunpack.c.l.b16 %v404
        %v885 = vunpack.c.l.b16 %v405
        %v886 = vunpack.c.l.b16 %v406
        %v887 = vunpack.c.l.b16 %v407
        %v888 = vunpack.c.l.b16 %v408
        %v889 = vunpack.c.l.b16 %v409
        %v890 = vunpack.c.l.b16 %v410
        %v891 = vunpack.c.l.b16 %v411
        %v892 = vunpack.c.l.b16 %v412
        %v893 = vunpack.c.l.b16 %v413
        %v894 = vunpack.c.l.b16 %v414
        %v895 = vunpack.c.l.b16 %v415
        %v896 = vunpack.c.l.b16 %v416
        %v897 = vunpack.c.l.b16 %v417
        %v898 = vunpack.c.l.b16 %v418
        %v899 = vunpack.c.l.b16 %v419
        %v900 = vunpack.c.l.b16 %v420
        %v901 = vunpack.c.l.b16 %v421
        %v902 = vunpack.c.l.b16 %v422
        %v903 = vunpack.c.l.b16 %v423
        %v904 = vunpack.c.l.b16 %v424
        %v905 = vunpack.c.l.b16 %v425
        %v906 = vunpack.c.l.b16 %v426
        %v907 = vunpack.c.l.b16 %v427
        %v908 = vunpack.c.l.b16 %v428
        %v909 = vunpack.c.l.b16 %v429
        %v910 = vunpack.c.l.b16 %v430
        %v911 = vunpack.c.l.b16 %v431
        %v912 = vunpack.c.l.b16 %v432
        %v913 = vunpack.c.l.b16 %v433
        %v914 = vunpack.c.l.b16 %v434
        %v915 = vunpack.c.l.b16 %v435
        %v916 = vunpack.c.l.b16 %v436
        %v917 = vunpack.c.l.b16 %v437
        %v918 = vunpack.c.l.b16 %v438
        %v919 = vunpack.c.l.b16 %v439
        %v920 = vpack.c.b16 %v857, %v856
        %v921 = vpack.c.b16 %v859, %v858
        %v922 = vpack.c.b16 %v861, %v860
        %v923 = vpack.c.b16 %v863, %v862
        %v924 = vpack.c.b16 %v865, %v864
        %v925 = vpack.c.b16 %v867, %v866
        %v926 = vpack.c.b16 %v869, %v868
        %v927 = vpack.c.b16 %v871, %v870
        %v928 = vpack.c.b16 %v873, %v872
        %v929 = vpack.c.b16 %v875, %v874
        %v930 = vpack.c.b16 %v877, %v876
        %v931 = vpack.c.b16 %v879, %v878
        %v932 = vpack.c.b16 %v881, %v880
        %v933 = vpack.c.b16 %v883, %v882
        %v934 = vpack.c.b16 %v885, %v884
        %v935 = vpack.c.b16 %v887, %v886
        %v936 = vpack.c.b16 %v889, %v888
        %v937 = vpack.c.b16 %v891, %v890
        %v938 = vpack.c.b16 %v893, %v892
        %v939 = vpack.c.b16 %v895, %v894
        %v940 = vpack.c.b16 %v897, %v896
        %v941 = vpack.c.b16 %v899, %v898
        %v942 = vpack.c.b16 %v901, %v900
        %v943 = vpack.c.b16 %v903, %v902
        %v944 = vpack.c.b16 %v905, %v904
        %v945 = vpack.c.b16 %v907, %v906
        %v946 = vpack.c.b16 %v909, %v908
        %v947 = vpack.c.b16 %v911, %v910
        %v948 = vpack.c.b16 %v913, %v912
        %v949 = vpack.c.b16 %v915, %v914
        %v950 = vpack.c.b16 %v917, %v916
        %v951 = vpack.c.b16 %v919, %v918
        %984 = vmatpush.bf16.msra.mxu0 %v927
        %985 = vmatpush.bf16.msra.mxu0 %v926
        %986 = vmatpush.bf16.msra.mxu0 %v925
        %987 = vmatpush.bf16.msra.mxu0 %v924
        %988 = vmatpush.bf16.msra.mxu0 %v923
        %989 = vmatpush.bf16.msra.mxu0 %v922
        %990 = vmatpush.bf16.msra.mxu0 %v921
        %991 = vmatpush.bf16.msra.mxu0 %v920
        %992 = vmatmul.bf16.gmra.mxu0 %v664
        %v993 = vpop.f32.mrf.mxu0
        %v994 = vadd.f32 0.0, %v993
        %v995 = vpop.f32.mrf.mxu0
        %v996 = vadd.f32 0.0, %v995
        %997 = vmatmul.bf16.gmra.mxu0 %v668
        %v998 = vpop.f32.mrf.mxu0
        %v999 = vadd.f32 0.0, %v998
        %v1000 = vpop.f32.mrf.mxu0
        %v1001 = vadd.f32 0.0, %v1000
        %1002 = vmatmul.bf16.gmra.mxu0 %v672
        %v1003 = vpop.f32.mrf.mxu0
        %v1004 = vadd.f32 0.0, %v1003
        %v1005 = vpop.f32.mrf.mxu0
        %v1006 = vadd.f32 0.0, %v1005
        %1007 = vmatmul.bf16.gmra.mxu0 %v676
        %v1008 = vpop.f32.mrf.mxu0
        %v1009 = vadd.f32 0.0, %v1008
        %v1010 = vpop.f32.mrf.mxu0
        %v1011 = vadd.f32 0.0, %v1010
        %1012 = vmatmul.bf16.gmra.mxu0 %v680
        %v1013 = vpop.f32.mrf.mxu0
        %v1014 = vadd.f32 0.0, %v1013
        %v1015 = vpop.f32.mrf.mxu0
        %v1016 = vadd.f32 0.0, %v1015
        %1017 = vmatmul.bf16.gmra.mxu0 %v684
        %v1018 = vpop.f32.mrf.mxu0
        %v1019 = vadd.f32 0.0, %v1018
        %v1020 = vpop.f32.mrf.mxu0
        %v1021 = vadd.f32 0.0, %v1020
        %1022 = vmatmul.bf16.gmra.mxu0 %v688
        %v1023 = vpop.f32.mrf.mxu0
        %v1024 = vadd.f32 0.0, %v1023
        %v1025 = vpop.f32.mrf.mxu0
        %v1026 = vadd.f32 0.0, %v1025
        %1027 = vmatmul.bf16.gmra.mxu0 %v692
        %v1028 = vpop.f32.mrf.mxu0
        %v1029 = vadd.f32 0.0, %v1028
        %v1030 = vpop.f32.mrf.mxu0
        %v1031 = vadd.f32 0.0, %v1030
        %1032 = vmatmul.bf16.gmra.mxu0 %v696
        %v1033 = vpop.f32.mrf.mxu0
        %v1034 = vadd.f32 0.0, %v1033
        %v1035 = vpop.f32.mrf.mxu0
        %v1036 = vadd.f32 0.0, %v1035
        %1037 = vmatmul.bf16.gmra.mxu0 %v700
        %v1038 = vpop.f32.mrf.mxu0
        %v1039 = vadd.f32 0.0, %v1038
        %v1040 = vpop.f32.mrf.mxu0
        %v1041 = vadd.f32 0.0, %v1040
        %1042 = vmatmul.bf16.gmra.mxu0 %v704
        %v1043 = vpop.f32.mrf.mxu0
        %v1044 = vadd.f32 0.0, %v1043
        %v1045 = vpop.f32.mrf.mxu0
        %v1046 = vadd.f32 0.0, %v1045
        %1047 = vmatmul.bf16.gmra.mxu0 %v708
        %v1048 = vpop.f32.mrf.mxu0
        %v1049 = vadd.f32 0.0, %v1048
        %v1050 = vpop.f32.mrf.mxu0
        %v1051 = vadd.f32 0.0, %v1050
        %1052 = vmatmul.bf16.gmra.mxu0 %v712
        %v1053 = vpop.f32.mrf.mxu0
        %v1054 = vadd.f32 0.0, %v1053
        %v1055 = vpop.f32.mrf.mxu0
        %v1056 = vadd.f32 0.0, %v1055
        %1057 = vmatmul.bf16.gmra.mxu0 %v716
        %v1058 = vpop.f32.mrf.mxu0
        %v1059 = vadd.f32 0.0, %v1058
        %v1060 = vpop.f32.mrf.mxu0
        %v1061 = vadd.f32 0.0, %v1060
        %1062 = vmatmul.bf16.gmra.mxu0 %v720
        %v1063 = vpop.f32.mrf.mxu0
        %v1064 = vadd.f32 0.0, %v1063
        %v1065 = vpop.f32.mrf.mxu0
        %v1066 = vadd.f32 0.0, %v1065
        %1067 = vmatmul.bf16.gmra.mxu0 %v724
        %v1068 = vpop.f32.mrf.mxu0
        %v1069 = vadd.f32 0.0, %v1068
        %v1070 = vpop.f32.mrf.mxu0
        %v1071 = vadd.f32 0.0, %v1070
        %1072 = vdwg.mxu0
        %1073 = vmatpush.bf16.msra.mxu0 %v935
        %1074 = vmatpush.bf16.msra.mxu0 %v934
        %1075 = vmatpush.bf16.msra.mxu0 %v933
        %1076 = vmatpush.bf16.msra.mxu0 %v932
        %1077 = vmatpush.bf16.msra.mxu0 %v931
        %1078 = vmatpush.bf16.msra.mxu0 %v930
        %1079 = vmatpush.bf16.msra.mxu0 %v929
        %1080 = vmatpush.bf16.msra.mxu0 %v928
        %1081 = vmatmul.bf16.gmra.mxu0 %v665
        %v1082 = vpop.f32.mrf.mxu0
        %v1083 = vadd.f32 %v994, %v1082
        %v1084 = vpop.f32.mrf.mxu0
        %v1085 = vadd.f32 %v996, %v1084
        %1086 = vmatmul.bf16.gmra.mxu0 %v669
        %v1087 = vpop.f32.mrf.mxu0
        %v1088 = vadd.f32 %v999, %v1087
        %v1089 = vpop.f32.mrf.mxu0
        %v1090 = vadd.f32 %v1001, %v1089
        %1091 = vmatmul.bf16.gmra.mxu0 %v673
        %v1092 = vpop.f32.mrf.mxu0
        %v1093 = vadd.f32 %v1004, %v1092
        %v1094 = vpop.f32.mrf.mxu0
        %v1095 = vadd.f32 %v1006, %v1094
        %1096 = vmatmul.bf16.gmra.mxu0 %v677
        %v1097 = vpop.f32.mrf.mxu0
        %v1098 = vadd.f32 %v1009, %v1097
        %v1099 = vpop.f32.mrf.mxu0
        %v1100 = vadd.f32 %v1011, %v1099
        %1101 = vmatmul.bf16.gmra.mxu0 %v681
        %v1102 = vpop.f32.mrf.mxu0
        %v1103 = vadd.f32 %v1014, %v1102
        %v1104 = vpop.f32.mrf.mxu0
        %v1105 = vadd.f32 %v1016, %v1104
        %1106 = vmatmul.bf16.gmra.mxu0 %v685
        %v1107 = vpop.f32.mrf.mxu0
        %v1108 = vadd.f32 %v1019, %v1107
        %v1109 = vpop.f32.mrf.mxu0
        %v1110 = vadd.f32 %v1021, %v1109
        %1111 = vmatmul.bf16.gmra.mxu0 %v689
        %v1112 = vpop.f32.mrf.mxu0
        %v1113 = vadd.f32 %v1024, %v1112
        %v1114 = vpop.f32.mrf.mxu0
        %v1115 = vadd.f32 %v1026, %v1114
        %1116 = vmatmul.bf16.gmra.mxu0 %v693
        %v1117 = vpop.f32.mrf.mxu0
        %v1118 = vadd.f32 %v1029, %v1117
        %v1119 = vpop.f32.mrf.mxu0
        %v1120 = vadd.f32 %v1031, %v1119
        %1121 = vmatmul.bf16.gmra.mxu0 %v697
        %v1122 = vpop.f32.mrf.mxu0
        %v1123 = vadd.f32 %v1034, %v1122
        %v1124 = vpop.f32.mrf.mxu0
        %v1125 = vadd.f32 %v1036, %v1124
        %1126 = vmatmul.bf16.gmra.mxu0 %v701
        %v1127 = vpop.f32.mrf.mxu0
        %v1128 = vadd.f32 %v1039, %v1127
        %v1129 = vpop.f32.mrf.mxu0
        %v1130 = vadd.f32 %v1041, %v1129
        %1131 = vmatmul.bf16.gmra.mxu0 %v705
        %v1132 = vpop.f32.mrf.mxu0
        %v1133 = vadd.f32 %v1044, %v1132
        %v1134 = vpop.f32.mrf.mxu0
        %v1135 = vadd.f32 %v1046, %v1134
        %1136 = vmatmul.bf16.gmra.mxu0 %v709
        %v1137 = vpop.f32.mrf.mxu0
        %v1138 = vadd.f32 %v1049, %v1137
        %v1139 = vpop.f32.mrf.mxu0
        %v1140 = vadd.f32 %v1051, %v1139
        %1141 = vmatmul.bf16.gmra.mxu0 %v713
        %v1142 = vpop.f32.mrf.mxu0
        %v1143 = vadd.f32 %v1054, %v1142
        %v1144 = vpop.f32.mrf.mxu0
        %v1145 = vadd.f32 %v1056, %v1144
        %1146 = vmatmul.bf16.gmra.mxu0 %v717
        %v1147 = vpop.f32.mrf.mxu0
        %v1148 = vadd.f32 %v1059, %v1147
        %v1149 = vpop.f32.mrf.mxu0
        %v1150 = vadd.f32 %v1061, %v1149
        %1151 = vmatmul.bf16.gmra.mxu0 %v721
        %v1152 = vpop.f32.mrf.mxu0
        %v1153 = vadd.f32 %v1064, %v1152
        %v1154 = vpop.f32.mrf.mxu0
        %v1155 = vadd.f32 %v1066, %v1154
        %1156 = vmatmul.bf16.gmra.mxu0 %v725
        %v1157 = vpop.f32.mrf.mxu0
        %v1158 = vadd.f32 %v1069, %v1157
        %v1159 = vpop.f32.mrf.mxu0
        %v1160 = vadd.f32 %v1071, %v1159
        %1161 = vdwg.mxu0
        %1162 = vmatpush.bf16.msra.mxu0 %v943
        %1163 = vmatpush.bf16.msra.mxu0 %v942
        %1164 = vmatpush.bf16.msra.mxu0 %v941
        %1165 = vmatpush.bf16.msra.mxu0 %v940
        %1166 = vmatpush.bf16.msra.mxu0 %v939
        %1167 = vmatpush.bf16.msra.mxu0 %v938
        %1168 = vmatpush.bf16.msra.mxu0 %v937
        %1169 = vmatpush.bf16.msra.mxu0 %v936
        %1170 = vmatmul.bf16.gmra.mxu0 %v666
        %v1171 = vpop.f32.mrf.mxu0
        %v1172 = vadd.f32 %v1083, %v1171
        %v1173 = vpop.f32.mrf.mxu0
        %v1174 = vadd.f32 %v1085, %v1173
        %1175 = vmatmul.bf16.gmra.mxu0 %v670
        %v1176 = vpop.f32.mrf.mxu0
        %v1177 = vadd.f32 %v1088, %v1176
        %v1178 = vpop.f32.mrf.mxu0
        %v1179 = vadd.f32 %v1090, %v1178
        %1180 = vmatmul.bf16.gmra.mxu0 %v674
        %v1181 = vpop.f32.mrf.mxu0
        %v1182 = vadd.f32 %v1093, %v1181
        %v1183 = vpop.f32.mrf.mxu0
        %v1184 = vadd.f32 %v1095, %v1183
        %1185 = vmatmul.bf16.gmra.mxu0 %v678
        %v1186 = vpop.f32.mrf.mxu0
        %v1187 = vadd.f32 %v1098, %v1186
        %v1188 = vpop.f32.mrf.mxu0
        %v1189 = vadd.f32 %v1100, %v1188
        %1190 = vmatmul.bf16.gmra.mxu0 %v682
        %v1191 = vpop.f32.mrf.mxu0
        %v1192 = vadd.f32 %v1103, %v1191
        %v1193 = vpop.f32.mrf.mxu0
        %v1194 = vadd.f32 %v1105, %v1193
        %1195 = vmatmul.bf16.gmra.mxu0 %v686
        %v1196 = vpop.f32.mrf.mxu0
        %v1197 = vadd.f32 %v1108, %v1196
        %v1198 = vpop.f32.mrf.mxu0
        %v1199 = vadd.f32 %v1110, %v1198
        %1200 = vmatmul.bf16.gmra.mxu0 %v690
        %v1201 = vpop.f32.mrf.mxu0
        %v1202 = vadd.f32 %v1113, %v1201
        %v1203 = vpop.f32.mrf.mxu0
        %v1204 = vadd.f32 %v1115, %v1203
        %1205 = vmatmul.bf16.gmra.mxu0 %v694
        %v1206 = vpop.f32.mrf.mxu0
        %v1207 = vadd.f32 %v1118, %v1206
        %v1208 = vpop.f32.mrf.mxu0
        %v1209 = vadd.f32 %v1120, %v1208
        %1210 = vmatmul.bf16.gmra.mxu0 %v698
        %v1211 = vpop.f32.mrf.mxu0
        %v1212 = vadd.f32 %v1123, %v1211
        %v1213 = vpop.f32.mrf.mxu0
        %v1214 = vadd.f32 %v1125, %v1213
        %1215 = vmatmul.bf16.gmra.mxu0 %v702
        %v1216 = vpop.f32.mrf.mxu0
        %v1217 = vadd.f32 %v1128, %v1216
        %v1218 = vpop.f32.mrf.mxu0
        %v1219 = vadd.f32 %v1130, %v1218
        %1220 = vmatmul.bf16.gmra.mxu0 %v706
        %v1221 = vpop.f32.mrf.mxu0
        %v1222 = vadd.f32 %v1133, %v1221
        %v1223 = vpop.f32.mrf.mxu0
        %v1224 = vadd.f32 %v1135, %v1223
        %1225 = vmatmul.bf16.gmra.mxu0 %v710
        %v1226 = vpop.f32.mrf.mxu0
        %v1227 = vadd.f32 %v1138, %v1226
        %v1228 = vpop.f32.mrf.mxu0
        %v1229 = vadd.f32 %v1140, %v1228
        %1230 = vmatmul.bf16.gmra.mxu0 %v714
        %v1231 = vpop.f32.mrf.mxu0
        %v1232 = vadd.f32 %v1143, %v1231
        %v1233 = vpop.f32.mrf.mxu0
        %v1234 = vadd.f32 %v1145, %v1233
        %1235 = vmatmul.bf16.gmra.mxu0 %v718
        %v1236 = vpop.f32.mrf.mxu0
        %v1237 = vadd.f32 %v1148, %v1236
        %v1238 = vpop.f32.mrf.mxu0
        %v1239 = vadd.f32 %v1150, %v1238
        %1240 = vmatmul.bf16.gmra.mxu0 %v722
        %v1241 = vpop.f32.mrf.mxu0
        %v1242 = vadd.f32 %v1153, %v1241
        %v1243 = vpop.f32.mrf.mxu0
        %v1244 = vadd.f32 %v1155, %v1243
        %1245 = vmatmul.bf16.gmra.mxu0 %v726
        %v1246 = vpop.f32.mrf.mxu0
        %v1247 = vadd.f32 %v1158, %v1246
        %v1248 = vpop.f32.mrf.mxu0
        %v1249 = vadd.f32 %v1160, %v1248
        %1250 = vdwg.mxu0
        %1251 = vmatpush.bf16.msra.mxu0 %v951
        %1252 = vmatpush.bf16.msra.mxu0 %v950
        %1253 = vmatpush.bf16.msra.mxu0 %v949
        %1254 = vmatpush.bf16.msra.mxu0 %v948
        %1255 = vmatpush.bf16.msra.mxu0 %v947
        %1256 = vmatpush.bf16.msra.mxu0 %v946
        %1257 = vmatpush.bf16.msra.mxu0 %v945
        %1258 = vmatpush.bf16.msra.mxu0 %v944
        %1259 = vmatmul.bf16.gmra.mxu0 %v667
        %v1260 = vpop.f32.mrf.mxu0
        %v1261 = vadd.f32 %v1172, %v1260
        %v1262 = vpop.f32.mrf.mxu0
        %v1263 = vadd.f32 %v1174, %v1262
        %1264 = vmatmul.bf16.gmra.mxu0 %v671
        %v1265 = vpop.f32.mrf.mxu0
        %v1266 = vadd.f32 %v1177, %v1265
        %v1267 = vpop.f32.mrf.mxu0
        %v1268 = vadd.f32 %v1179, %v1267
        %1269 = vmatmul.bf16.gmra.mxu0 %v675
        %v1270 = vpop.f32.mrf.mxu0
        %v1271 = vadd.f32 %v1182, %v1270
        %v1272 = vpop.f32.mrf.mxu0
        %v1273 = vadd.f32 %v1184, %v1272
        %1274 = vmatmul.bf16.gmra.mxu0 %v679
        %v1275 = vpop.f32.mrf.mxu0
        %v1276 = vadd.f32 %v1187, %v1275
        %v1277 = vpop.f32.mrf.mxu0
        %v1278 = vadd.f32 %v1189, %v1277
        %1279 = vmatmul.bf16.gmra.mxu0 %v683
        %v1280 = vpop.f32.mrf.mxu0
        %v1281 = vadd.f32 %v1192, %v1280
        %v1282 = vpop.f32.mrf.mxu0
        %v1283 = vadd.f32 %v1194, %v1282
        %1284 = vmatmul.bf16.gmra.mxu0 %v687
        %v1285 = vpop.f32.mrf.mxu0
        %v1286 = vadd.f32 %v1197, %v1285
        %v1287 = vpop.f32.mrf.mxu0
        %v1288 = vadd.f32 %v1199, %v1287
        %1289 = vmatmul.bf16.gmra.mxu0 %v691
        %v1290 = vpop.f32.mrf.mxu0
        %v1291 = vadd.f32 %v1202, %v1290
        %v1292 = vpop.f32.mrf.mxu0
        %v1293 = vadd.f32 %v1204, %v1292
        %1294 = vmatmul.bf16.gmra.mxu0 %v695
        %v1295 = vpop.f32.mrf.mxu0
        %v1296 = vadd.f32 %v1207, %v1295
        %v1297 = vpop.f32.mrf.mxu0
        %v1298 = vadd.f32 %v1209, %v1297
        %1299 = vmatmul.bf16.gmra.mxu0 %v699
        %v1300 = vpop.f32.mrf.mxu0
        %v1301 = vadd.f32 %v1212, %v1300
        %v1302 = vpop.f32.mrf.mxu0
        %v1303 = vadd.f32 %v1214, %v1302
        %1304 = vmatmul.bf16.gmra.mxu0 %v703
        %v1305 = vpop.f32.mrf.mxu0
        %v1306 = vadd.f32 %v1217, %v1305
        %v1307 = vpop.f32.mrf.mxu0
        %v1308 = vadd.f32 %v1219, %v1307
        %1309 = vmatmul.bf16.gmra.mxu0 %v707
        %v1310 = vpop.f32.mrf.mxu0
        %v1311 = vadd.f32 %v1222, %v1310
        %v1312 = vpop.f32.mrf.mxu0
        %v1313 = vadd.f32 %v1224, %v1312
        %1314 = vmatmul.bf16.gmra.mxu0 %v711
        %v1315 = vpop.f32.mrf.mxu0
        %v1316 = vadd.f32 %v1227, %v1315
        %v1317 = vpop.f32.mrf.mxu0
        %v1318 = vadd.f32 %v1229, %v1317
        %1319 = vmatmul.bf16.gmra.mxu0 %v715
        %v1320 = vpop.f32.mrf.mxu0
        %v1321 = vadd.f32 %v1232, %v1320
        %v1322 = vpop.f32.mrf.mxu0
        %v1323 = vadd.f32 %v1234, %v1322
        %1324 = vmatmul.bf16.gmra.mxu0 %v719
        %v1325 = vpop.f32.mrf.mxu0
        %v1326 = vadd.f32 %v1237, %v1325
        %v1327 = vpop.f32.mrf.mxu0
        %v1328 = vadd.f32 %v1239, %v1327
        %1329 = vmatmul.bf16.gmra.mxu0 %v723
        %v1330 = vpop.f32.mrf.mxu0
        %v1331 = vadd.f32 %v1242, %v1330
        %v1332 = vpop.f32.mrf.mxu0
        %v1333 = vadd.f32 %v1244, %v1332
        %1334 = vmatmul.bf16.gmra.mxu0 %v727
        %v1335 = vpop.f32.mrf.mxu0
        %v1336 = vadd.f32 %v1247, %v1335
        %v1337 = vpop.f32.mrf.mxu0
        %v1338 = vadd.f32 %v1249, %v1337
        %1339 = vdwg.mxu0
        %v1340 = vadd.f32 %v440, %v1261
        %v1341 = vadd.f32 %v441, %v1263
        %v1342 = vadd.f32 %v442, %v1266
        %v1343 = vadd.f32 %v443, %v1268
        %v1344 = vadd.f32 %v444, %v1271
        %v1345 = vadd.f32 %v445, %v1273
        %v1346 = vadd.f32 %v446, %v1276
        %v1347 = vadd.f32 %v447, %v1278
        %v1348 = vadd.f32 %v448, %v1281
        %v1349 = vadd.f32 %v449, %v1283
        %v1350 = vadd.f32 %v450, %v1286
        %v1351 = vadd.f32 %v451, %v1288
        %v1352 = vadd.f32 %v452, %v1291
        %v1353 = vadd.f32 %v453, %v1293
        %v1354 = vadd.f32 %v454, %v1296
        %v1355 = vadd.f32 %v455, %v1298
        %v1356 = vadd.f32 %v456, %v1301
        %v1357 = vadd.f32 %v457, %v1303
        %v1358 = vadd.f32 %v458, %v1306
        %v1359 = vadd.f32 %v459, %v1308
        %v1360 = vadd.f32 %v460, %v1311
        %v1361 = vadd.f32 %v461, %v1313
        %v1362 = vadd.f32 %v462, %v1316
        %v1363 = vadd.f32 %v463, %v1318
        %v1364 = vadd.f32 %v464, %v1321
        %v1365 = vadd.f32 %v465, %v1323
        %v1366 = vadd.f32 %v466, %v1326
        %v1367 = vadd.f32 %v467, %v1328
        %v1368 = vadd.f32 %v468, %v1331
        %v1369 = vadd.f32 %v469, %v1333
        %v1370 = vadd.f32 %v470, %v1336
        %v1371 = vadd.f32 %v471, %v1338
        %1372 = vst [vmem:[#allocation2] sm:$0xff] %v1340
        %1373 = vst [vmem:[#allocation2 + $0x8] sm:$0xff] %v1341
        %1374 = vst [vmem:[#allocation2 + $0x10] sm:$0xff] %v1342
        %1375 = vst [vmem:[#allocation2 + $0x18] sm:$0xff] %v1343
        %1376 = vst [vmem:[#allocation2 + $0x20] sm:$0xff] %v1344
        %1377 = vst [vmem:[#allocation2 + $0x28] sm:$0xff] %v1345
        %1378 = vst [vmem:[#allocation2 + $0x30] sm:$0xff] %v1346
        %1379 = vst [vmem:[#allocation2 + $0x38] sm:$0xff] %v1347
        %1380 = vst [vmem:[#allocation2 + $0x40] sm:$0xff] %v1348
        %1381 = vst [vmem:[#allocation2 + $0x48] sm:$0xff] %v1349
        %1382 = vst [vmem:[#allocation2 + $0x50] sm:$0xff] %v1350
        %1383 = vst [vmem:[#allocation2 + $0x58] sm:$0xff] %v1351
        %1384 = vst [vmem:[#allocation2 + $0x60] sm:$0xff] %v1352
        %1385 = vst [vmem:[#allocation2 + $0x68] sm:$0xff] %v1353
        %1386 = vst [vmem:[#allocation2 + $0x70] sm:$0xff] %v1354
        %1387 = vst [vmem:[#allocation2 + $0x78] sm:$0xff] %v1355
        %1388 = vst [vmem:[#allocation2 + $0x80] sm:$0xff] %v1356
        %1389 = vst [vmem:[#allocation2 + $0x88] sm:$0xff] %v1357
        %1390 = vst [vmem:[#allocation2 + $0x90] sm:$0xff] %v1358
        %1391 = vst [vmem:[#allocation2 + $0x98] sm:$0xff] %v1359
        %1392 = vst [vmem:[#allocation2 + $0xa0] sm:$0xff] %v1360
        %1393 = vst [vmem:[#allocation2 + $0xa8] sm:$0xff] %v1361
        %1394 = vst [vmem:[#allocation2 + $0xb0] sm:$0xff] %v1362
        %1395 = vst [vmem:[#allocation2 + $0xb8] sm:$0xff] %v1363
        %1396 = vst [vmem:[#allocation2 + $0xc0] sm:$0xff] %v1364
        %1397 = vst [vmem:[#allocation2 + $0xc8] sm:$0xff] %v1365
        %1398 = vst [vmem:[#allocation2 + $0xd0] sm:$0xff] %v1366
        %1399 = vst [vmem:[#allocation2 + $0xd8] sm:$0xff] %v1367
        %1400 = vst [vmem:[#allocation2 + $0xe0] sm:$0xff] %v1368
        %1401 = vst [vmem:[#allocation2 + $0xe8] sm:$0xff] %v1369
        %1402 = vst [vmem:[#allocation2 + $0xf0] sm:$0xff] %v1370
        %1403 = vst [vmem:[#allocation2 + $0xf8] sm:$0xff] %v1371
        // Predicated region
        $region53: #{tpu_custom_call.1} parent=35 // pred_check
          %p1404 = pneg %p271
        $region54: #{tpu_custom_call.1} parent=35 // pred_check_branch
          %1406 = sbr.rel (%p1404) target = $region56
        $region55: #{tpu_custom_call.1} parent=35 // pred_region
          %v1407 = vld [vmem:[#allocation2] sm:$0xff]
          %v1408 = vld [vmem:[#allocation2 + $0x8] sm:$0xff]
          %v1409 = vld [vmem:[#allocation2 + $0x10] sm:$0xff]
          %v1410 = vld [vmem:[#allocation2 + $0x18] sm:$0xff]
          %v1411 = vld [vmem:[#allocation2 + $0x20] sm:$0xff]
          %v1412 = vld [vmem:[#allocation2 + $0x28] sm:$0xff]
          %v1413 = vld [vmem:[#allocation2 + $0x30] sm:$0xff]
          %v1414 = vld [vmem:[#allocation2 + $0x38] sm:$0xff]
          %v1415 = vld [vmem:[#allocation2 + $0x40] sm:$0xff]
          %v1416 = vld [vmem:[#allocation2 + $0x48] sm:$0xff]
          %v1417 = vld [vmem:[#allocation2 + $0x50] sm:$0xff]
          %v1418 = vld [vmem:[#allocation2 + $0x58] sm:$0xff]
          %v1419 = vld [vmem:[#allocation2 + $0x60] sm:$0xff]
          %v1420 = vld [vmem:[#allocation2 + $0x68] sm:$0xff]
          %v1421 = vld [vmem:[#allocation2 + $0x70] sm:$0xff]
          %v1422 = vld [vmem:[#allocation2 + $0x78] sm:$0xff]
          %v1423 = vld [vmem:[#allocation2 + $0x80] sm:$0xff]
          %v1424 = vld [vmem:[#allocation2 + $0x88] sm:$0xff]
          %v1425 = vld [vmem:[#allocation2 + $0x90] sm:$0xff]
          %v1426 = vld [vmem:[#allocation2 + $0x98] sm:$0xff]
          %v1427 = vld [vmem:[#allocation2 + $0xa0] sm:$0xff]
          %v1428 = vld [vmem:[#allocation2 + $0xa8] sm:$0xff]
          %v1429 = vld [vmem:[#allocation2 + $0xb0] sm:$0xff]
          %v1430 = vld [vmem:[#allocation2 + $0xb8] sm:$0xff]
          %v1431 = vld [vmem:[#allocation2 + $0xc0] sm:$0xff]
          %v1432 = vld [vmem:[#allocation2 + $0xc8] sm:$0xff]
          %v1433 = vld [vmem:[#allocation2 + $0xd0] sm:$0xff]
          %v1434 = vld [vmem:[#allocation2 + $0xd8] sm:$0xff]
          %v1435 = vld [vmem:[#allocation2 + $0xe0] sm:$0xff]
          %v1436 = vld [vmem:[#allocation2 + $0xe8] sm:$0xff]
          %v1437 = vld [vmem:[#allocation2 + $0xf0] sm:$0xff]
          %v1438 = vld [vmem:[#allocation2 + $0xf8] sm:$0xff]
          %v1439 = vld [vmem:[#allocation8] sm:$0xff]
          %v1440 = vld [vmem:[#allocation8 + $0x8] sm:$0xff]
          %v1441 = vld [vmem:[#allocation8 + $0x10] sm:$0xff]
          %v1442 = vld [vmem:[#allocation8 + $0x18] sm:$0xff]
          %v1443 = vld [vmem:[#allocation8 + $0x20] sm:$0xff]
          %v1444 = vld [vmem:[#allocation8 + $0x28] sm:$0xff]
          %v1445 = vld [vmem:[#allocation8 + $0x30] sm:$0xff]
          %v1446 = vld [vmem:[#allocation8 + $0x38] sm:$0xff]
          %v1447 = vld [vmem:[#allocation8 + $0x40] sm:$0xff]
          %v1448 = vld [vmem:[#allocation8 + $0x48] sm:$0xff]
          %v1449 = vld [vmem:[#allocation8 + $0x50] sm:$0xff]
          %v1450 = vld [vmem:[#allocation8 + $0x58] sm:$0xff]
          %v1451 = vld [vmem:[#allocation8 + $0x60] sm:$0xff]
          %v1452 = vld [vmem:[#allocation8 + $0x68] sm:$0xff]
          %v1453 = vld [vmem:[#allocation8 + $0x70] sm:$0xff]
          %v1454 = vld [vmem:[#allocation8 + $0x78] sm:$0xff]
          %v1455 = vld [vmem:[%s3] sm:$0x1]
          %v1457 = vperm.slane %v1455, 0
          %1459 = vmatpush.msra.mxu0 %v1454
          %1460 = vmatpush.msra.mxu0 %v1453
          %1461 = vmatpush.msra.mxu0 %v1452
          %1462 = vmatpush.msra.mxu0 %v1451
          %1463 = vmatpush.msra.mxu0 %v1450
          %1464 = vmatpush.msra.mxu0 %v1449
          %1465 = vmatpush.msra.mxu0 %v1448
          %1466 = vmatpush.msra.mxu0 %v1447
          %1467 = vmatpush.msra.mxu0 %v1446
          %1468 = vmatpush.msra.mxu0 %v1445
          %1469 = vmatpush.msra.mxu0 %v1444
          %1470 = vmatpush.msra.mxu0 %v1443
          %1471 = vmatpush.msra.mxu0 %v1442
          %1472 = vmatpush.msra.mxu0 %v1441
          %1473 = vmatpush.msra.mxu0 %v1440
          %1474 = vmatpush.msra.mxu0 %v1439
          %1475 = vmatmul.f32.gmra.mxu0 %v1407
          %v1476 = vpop.f32.mrf.mxu0
          %v1477 = vadd.f32 %v1457, %v1476
          %1478 = vmatmul.f32.gmra.mxu0 %v1408
          %v1479 = vpop.f32.mrf.mxu0
          %v1480 = vadd.f32 %v1457, %v1479
          %1481 = vmatmul.f32.gmra.mxu0 %v1409
          %v1482 = vpop.f32.mrf.mxu0
          %v1483 = vadd.f32 %v1457, %v1482
          %1484 = vmatmul.f32.gmra.mxu0 %v1410
          %v1485 = vpop.f32.mrf.mxu0
          %v1486 = vadd.f32 %v1457, %v1485
          %1487 = vmatmul.f32.gmra.mxu0 %v1411
          %v1488 = vpop.f32.mrf.mxu0
          %v1489 = vadd.f32 %v1457, %v1488
          %1490 = vmatmul.f32.gmra.mxu0 %v1412
          %v1491 = vpop.f32.mrf.mxu0
          %v1492 = vadd.f32 %v1457, %v1491
          %1493 = vmatmul.f32.gmra.mxu0 %v1413
          %v1494 = vpop.f32.mrf.mxu0
          %v1495 = vadd.f32 %v1457, %v1494
          %1496 = vmatmul.f32.gmra.mxu0 %v1414
          %v1497 = vpop.f32.mrf.mxu0
          %v1498 = vadd.f32 %v1457, %v1497
          %1499 = vmatmul.f32.gmra.mxu0 %v1415
          %v1500 = vpop.f32.mrf.mxu0
          %v1501 = vadd.f32 %v1457, %v1500
          %1502 = vmatmul.f32.gmra.mxu0 %v1416
          %v1503 = vpop.f32.mrf.mxu0
          %v1504 = vadd.f32 %v1457, %v1503
          %1505 = vmatmul.f32.gmra.mxu0 %v1417
          %v1506 = vpop.f32.mrf.mxu0
          %v1507 = vadd.f32 %v1457, %v1506
          %1508 = vmatmul.f32.gmra.mxu0 %v1418
          %v1509 = vpop.f32.mrf.mxu0
          %v1510 = vadd.f32 %v1457, %v1509
          %1511 = vmatmul.f32.gmra.mxu0 %v1419
          %v1512 = vpop.f32.mrf.mxu0
          %v1513 = vadd.f32 %v1457, %v1512
          %1514 = vmatmul.f32.gmra.mxu0 %v1420
          %v1515 = vpop.f32.mrf.mxu0
          %v1516 = vadd.f32 %v1457, %v1515
          %1517 = vmatmul.f32.gmra.mxu0 %v1421
          %v1518 = vpop.f32.mrf.mxu0
          %v1519 = vadd.f32 %v1457, %v1518
          %1520 = vmatmul.f32.gmra.mxu0 %v1422
          %v1521 = vpop.f32.mrf.mxu0
          %v1522 = vadd.f32 %v1457, %v1521
          %1523 = vmatmul.f32.gmra.mxu0 %v1423
          %v1524 = vpop.f32.mrf.mxu0
          %v1525 = vadd.f32 %v1457, %v1524
          %1526 = vmatmul.f32.gmra.mxu0 %v1424
          %v1527 = vpop.f32.mrf.mxu0
          %v1528 = vadd.f32 %v1457, %v1527
          %1529 = vmatmul.f32.gmra.mxu0 %v1425
          %v1530 = vpop.f32.mrf.mxu0
          %v1531 = vadd.f32 %v1457, %v1530
          %1532 = vmatmul.f32.gmra.mxu0 %v1426
          %v1533 = vpop.f32.mrf.mxu0
          %v1534 = vadd.f32 %v1457, %v1533
          %1535 = vmatmul.f32.gmra.mxu0 %v1427
          %v1536 = vpop.f32.mrf.mxu0
          %v1537 = vadd.f32 %v1457, %v1536
          %1538 = vmatmul.f32.gmra.mxu0 %v1428
          %v1539 = vpop.f32.mrf.mxu0
          %v1540 = vadd.f32 %v1457, %v1539
          %1541 = vmatmul.f32.gmra.mxu0 %v1429
          %v1542 = vpop.f32.mrf.mxu0
          %v1543 = vadd.f32 %v1457, %v1542
          %1544 = vmatmul.f32.gmra.mxu0 %v1430
          %v1545 = vpop.f32.mrf.mxu0
          %v1546 = vadd.f32 %v1457, %v1545
          %1547 = vmatmul.f32.gmra.mxu0 %v1431
          %v1548 = vpop.f32.mrf.mxu0
          %v1549 = vadd.f32 %v1457, %v1548
          %1550 = vmatmul.f32.gmra.mxu0 %v1432
          %v1551 = vpop.f32.mrf.mxu0
          %v1552 = vadd.f32 %v1457, %v1551
          %1553 = vmatmul.f32.gmra.mxu0 %v1433
          %v1554 = vpop.f32.mrf.mxu0
          %v1555 = vadd.f32 %v1457, %v1554
          %1556 = vmatmul.f32.gmra.mxu0 %v1434
          %v1557 = vpop.f32.mrf.mxu0
          %v1558 = vadd.f32 %v1457, %v1557
          %1559 = vmatmul.f32.gmra.mxu0 %v1435
          %v1560 = vpop.f32.mrf.mxu0
          %v1561 = vadd.f32 %v1457, %v1560
          %1562 = vmatmul.f32.gmra.mxu0 %v1436
          %v1563 = vpop.f32.mrf.mxu0
          %v1564 = vadd.f32 %v1457, %v1563
          %1565 = vmatmul.f32.gmra.mxu0 %v1437
          %v1566 = vpop.f32.mrf.mxu0
          %v1567 = vadd.f32 %v1457, %v1566
          %1568 = vmatmul.f32.gmra.mxu0 %v1438
          %v1569 = vpop.f32.mrf.mxu0
          %v1570 = vadd.f32 %v1457, %v1569
          %1571 = vdwg.mxu0
          %1572 = vst [vmem:[%s267] sm:$0xff] %v1477
          %1573 = vst [vmem:[%s267 + $0x8] sm:$0xff] %v1480
          %1574 = vst [vmem:[%s267 + $0x10] sm:$0xff] %v1483
          %1575 = vst [vmem:[%s267 + $0x18] sm:$0xff] %v1486
          %1576 = vst [vmem:[%s267 + $0x20] sm:$0xff] %v1489
          %1577 = vst [vmem:[%s267 + $0x28] sm:$0xff] %v1492
          %1578 = vst [vmem:[%s267 + $0x30] sm:$0xff] %v1495
          %1579 = vst [vmem:[%s267 + $0x38] sm:$0xff] %v1498
          %1580 = vst [vmem:[%s267 + $0x40] sm:$0xff] %v1501
          %1581 = vst [vmem:[%s267 + $0x48] sm:$0xff] %v1504
          %1582 = vst [vmem:[%s267 + $0x50] sm:$0xff] %v1507
          %1583 = vst [vmem:[%s267 + $0x58] sm:$0xff] %v1510
          %1584 = vst [vmem:[%s267 + $0x60] sm:$0xff] %v1513
          %1585 = vst [vmem:[%s267 + $0x68] sm:$0xff] %v1516
          %1586 = vst [vmem:[%s267 + $0x70] sm:$0xff] %v1519
          %1587 = vst [vmem:[%s267 + $0x78] sm:$0xff] %v1522
          %1588 = vst [vmem:[%s267 + $0x80] sm:$0xff] %v1525
          %1589 = vst [vmem:[%s267 + $0x88] sm:$0xff] %v1528
          %1590 = vst [vmem:[%s267 + $0x90] sm:$0xff] %v1531
          %1591 = vst [vmem:[%s267 + $0x98] sm:$0xff] %v1534
          %1592 = vst [vmem:[%s267 + $0xa0] sm:$0xff] %v1537
          %1593 = vst [vmem:[%s267 + $0xa8] sm:$0xff] %v1540
          %1594 = vst [vmem:[%s267 + $0xb0] sm:$0xff] %v1543
          %1595 = vst [vmem:[%s267 + $0xb8] sm:$0xff] %v1546
          %1596 = vst [vmem:[%s267 + $0xc0] sm:$0xff] %v1549
          %1597 = vst [vmem:[%s267 + $0xc8] sm:$0xff] %v1552
          %1598 = vst [vmem:[%s267 + $0xd0] sm:$0xff] %v1555
          %1599 = vst [vmem:[%s267 + $0xd8] sm:$0xff] %v1558
          %1600 = vst [vmem:[%s267 + $0xe0] sm:$0xff] %v1561
          %1601 = vst [vmem:[%s267 + $0xe8] sm:$0xff] %v1564
          %1602 = vst [vmem:[%s267 + $0xf0] sm:$0xff] %v1567
          %1603 = vst [vmem:[%s267 + $0xf8] sm:$0xff] %v1570
        $region56: #{tpu_custom_call.1} parent=35 // pred_fallthru
          _
        %s1604 = sand.u32 %s133, 1
        %s1605 = scalar_lea.sflag [#allocation5], %s1604
        %s1606 = sand.u32 %s133, 1
        %s1607 = smul.addr %s1606, 256
        %s1608 = scalar_lea.vmem [#allocation9], %s1607
        // Predicated region
        $region57: #{tpu_custom_call.1} parent=35 // pred_check
          %p1609 = pneg %p143
        $region58: #{tpu_custom_call.1} parent=35 // pred_check_branch
          %1611 = sbr.rel (%p1609) target = $region60
        $region59: #{tpu_custom_call.1} parent=35 // pred_region
          %s1612 = smul.u32 32, %s26
          %1614 = vsyncadd %s1605, 0
          %s1615 = smul.addr %s1612, 8
          %s1616 = scalar_lea.hbm %s4, %s1615
          %s1617 = sshll.u32 %s1608, 4
          %s1618 = int_to_ptr.vmem [resolvable:$true] %s1617
          %s1619 = sshll.u32 %s1616, 4
          %s1620 = int_to_ptr.hbm [resolvable:$true] %s1619
          %1625 = dma.vmem_to_hbm [thread:$0]  %s1618, 4096, %s1620, %s1605, 128, 128, 8
        $region60: #{tpu_custom_call.1} parent=35 // pred_fallthru
          _
      $region36: #{tpu_custom_call.1} parent=5 // pred_fallthru
        _
      %p1626 = scmp.le.s32.totalorder 2, %s17
      // Predicated region
      $region61: #{tpu_custom_call.1} parent=5 // pred_check
        %p1627 = pneg %p1626
      $region62: #{tpu_custom_call.1} parent=5 // pred_check_branch
        %1629 = sbr.rel (%p1627) target = $region64
      $region63: #{tpu_custom_call.1} parent=5 // pred_region
        %s1630 = ssub.s32 %s17, 2
        // Predicated region
        $region65: #{tpu_custom_call.1} parent=63 // pred_check
          %p1631 = pneg %p149
        $region66: #{tpu_custom_call.1} parent=63 // pred_check_branch
          %1633 = sbr.rel (%p1631) target = $region68
        $region67: #{tpu_custom_call.1} parent=63 // pred_region
          %s1634 = sand.u32 %s134, 1
          %s1635 = scalar_lea.sflag [#allocation5], %s1634
          %s1636 = sand.u32 %s134, 1
          %s1637 = smul.addr %s1636, 256
          %s1638 = scalar_lea.vmem [#allocation9], %s1637
          %1640 = dma.done %s1635, 4096
        $region68: #{tpu_custom_call.1} parent=63 // pred_fallthru
          _
      $region64: #{tpu_custom_call.1} parent=5 // pred_fallthru
        _
    $region6: #{tpu_custom_call.1} parent=1 // loop_footer
      %s21 = sadd.s32 1, %s17
    $region7: #{tpu_custom_call.1} parent=1 // loop_footer_branch
      %16 = sbr.rel target = $region3
    $region8: #{tpu_custom_call.1} parent=1 // loop_exit
      _
    %1641 = vsyncpa [#allocation4], 1
    %s1642 = scalar_lea.sflag [#allocation4], 1
    %1643 = vsyncpa %s1642, 1
    %1644 = vsyncpa [#allocation7], 1
    %1645 = vsyncpa [#allocation5], 1
    %s1646 = scalar_lea.sflag [#allocation5], 1
    %1647 = vsyncpa %s1646, 1

</llo_original>
